<compile_context>
chip_gen: v7x
topology: tpu7x:2x2x1
jax: 0.10.0
libtpu: 0.0.40
codegen_flags: <defaults>
</compile_context>

<pallas_src>
import functools

import jax
import jax.numpy as jnp
from jax import lax
from jax.experimental import pallas as pl
from jax.experimental.pallas import tpu as pltpu

# ---- synthetic hyperparameters consistent with the module -------------------
MAP_H, MAP_W = 16, 16                      # map_size
HW = MAP_H * MAP_W                         # 256  (location-channel width)
IN_CHANNELS = 4                            # channels of the global state
IN_FEATURES = IN_CHANNELS * HW             # 1024 (module's `in_features`)
FC1_IN = IN_FEATURES + HW                  # 1280 (torch fc1 input width)
NUM_WORKER_ACTIONS = 7                     # WorkerAction.NUMBER_OF_ACTIONS
N_PAD = 128                                # lane-dense width for fc3 / logits
BN_EPS = 1e-5
MAX_BATCH = 512                            # exact-BN single-invocation ceiling


def actor_head_forward(x_nchw, loc, params):
    """Forward pass of ActorHead('Worker').  x_nchw: (B,C,H,W); loc: (B,2) int."""
    B = x_nchw.shape[0]

    # Training-mode BatchNorm needs full-batch statistics -> the whole batch is
    # processed in a single kernel invocation.
    # TODO(synk): for B > MAX_BATCH add a cross-tile sum/sum-sq reduction pass.
    assert B <= MAX_BATCH, "batch too large for single-invocation BatchNorm"

    # ---- host-side packing: no concat buffer, no scatter, no padding copy ---
    x2d = x_nchw.reshape(B, IN_FEATURES).astype(jnp.bfloat16)
    loc_flat = jnp.clip(loc[:, 0] * MAP_W + loc[:, 1], 0, HW - 1)
    loc_flat = loc_flat.astype(jnp.int32).reshape(B, 1)

    bf16 = lambda a: a.astype(jnp.bfloat16)

    # fc1 weight split into state / location-channel slices (same math as the
    # torch cat((x, channel_location), dim=1) @ W1^T).
    w1_main = bf16(params["w1"][:IN_FEATURES])        # (1024, 256)
    w1_loc = bf16(params["w1"][IN_FEATURES:])         # (256, 256)
    w2 = bf16(params["w2"])                           # (256, 128)

    # fc3 / logits padded to 128 lanes.  Zero-padded fc3 columns stay exactly 0
    # through ReLU+BN; the logits bias carries -1e30 on its padded lanes so the
    # softmax mask is baked in (no lane iota/select needed in-kernel).
    w3p = bf16(jnp.pad(params["w3"], ((0, 0), (0, N_PAD - 64))))
    b3p = jnp.pad(params["b3"], ((0, 0), (0, N_PAD - 64)))
    g3p = jnp.pad(params["g3"], ((0, 0), (0, N_PAD - 64)), constant_values=1.0)
    be3p = jnp.pad(params["be3"], ((0, 0), (0, N_PAD - 64)))
    w4p = bf16(jnp.pad(params["w4"],
                       ((0, N_PAD - 64), (0, N_PAD - NUM_WORKER_ACTIONS))))
    b4p = jnp.pad(params["b4"], ((0, 0), (0, N_PAD - NUM_WORKER_ACTIONS)),
                  constant_values=-1e30)

    inv_n = 1.0 / float(B)

    def kernel(x_ref, loc_ref,
               w1m_ref, w1l_ref, b1_ref, g1_ref, be1_ref,
               w2_ref, b2_ref, g2_ref, be2_ref,
               w3_ref, b3_ref, g3_ref, be3_ref,
               w4_ref, b4_ref,
               out_ref):
        def bn_relu(h, g_ref, be_ref):
            # BatchNorm1d (training mode): biased batch stats over the full
            # (unpadded) batch, two-pass variance, folded scale/shift FMA.
            h = jnp.maximum(h, 0.0)
            mean = jnp.sum(h, axis=0, keepdims=True) * inv_n
            d = h - mean
            var = jnp.sum(d * d, axis=0, keepdims=True) * inv_n
            scale = g_ref[...] * lax.rsqrt(var + BN_EPS)
            return d * scale + be_ref[...]

        def linear(h_f32, w_ref, b_ref):
            # bf16 MXU operands, f32 accumulation, f32 bias add.
            return jnp.dot(h_f32.astype(jnp.bfloat16), w_ref[...],
                           preferred_element_type=jnp.float32) + b_ref[...]

        x = x_ref[...]                                          # (B, 1024) bf16
        onehot = jnp.where(
            lax.broadcasted_iota(jnp.int32, (B, HW), 1) == loc_ref[...],
            1.0, 0.0).astype(jnp.bfloat16)                      # (B, 256) bf16

        # fc1: h = x @ w1_main + onehot @ w1_loc + b1   (no (B,1280) concat)
        h = jnp.dot(x, w1m_ref[...], preferred_element_type=jnp.float32)
        h = h + jnp.dot(onehot, w1l_ref[...],
                        preferred_element_type=jnp.float32) + b1_ref[...]
        h = bn_relu(h, g1_ref, be1_ref)                           # (B, 256) f32
        h = bn_relu(linear(h, w2_ref, b2_ref), g2_ref, be2_ref)   # (B, 128)
        h = bn_relu(linear(h, w3_ref, b3_ref), g3_ref, be3_ref)   # (B, 128 pad)

        # Lane-dense logits; padded lanes already carry -1e30 via b4, so they
        # vanish in the softmax.  Exact divide for the denominator.
        logits = linear(h, w4_ref, b4_ref)                        # (B, 128)
        logits = logits - jnp.max(logits, axis=-1, keepdims=True)
        e = jnp.exp(logits)
        out_ref[...] = e / jnp.sum(e, axis=-1, keepdims=True)

    # Full-array blocks (exempt from the (8,128) divisibility rule) with
    # constant index maps: every operand is DMA'd once and stays VMEM-resident.
    spec = lambda shape: pl.BlockSpec(shape, lambda i: (0, 0))

    # TODO(synk): when the workload provides multiple independent batches
    # (envs), stack them along a leading "parallel" grid axis (one full batch
    # per step, exact per-batch BN stats) so both v7x TensorCores are busy.
    out = pl.pallas_call(
        kernel,
        grid=(1,),
        out_shape=jax.ShapeDtypeStruct((B, N_PAD), jnp.float32),
        in_specs=[
            spec((B, IN_FEATURES)),                    # x (bf16)
            spec((B, 1)),                              # flat location idx
            spec((IN_FEATURES, 256)),                  # w1_main (bf16)
            spec((HW, 256)),                           # w1_loc (bf16)
            spec((1, 256)), spec((1, 256)), spec((1, 256)),        # b1,g1,be1
            spec((256, 128)),                          # w2 (bf16)
            spec((1, 128)), spec((1, 128)), spec((1, 128)),        # b2,g2,be2
            spec((128, N_PAD)),                        # w3 (bf16, padded)
            spec((1, N_PAD)), spec((1, N_PAD)), spec((1, N_PAD)),  # b3,g3,be3
            spec((128, N_PAD)),                        # w4 (bf16, padded)
            spec((1, N_PAD)),                          # b4 (padded with -1e30)
        ],
        out_specs=spec((B, N_PAD)),
        compiler_params=pltpu.CompilerParams(
            dimension_semantics=("arbitrary",),
            vmem_limit_bytes=32 * 1024 * 1024),
    )(x2d, loc_flat,
      w1_main, w1_loc, params["b1"], params["g1"], params["be1"],
      w2, params["b2"], params["g2"], params["be2"],
      w3p, b3p, g3p, be3p,
      w4p, b4p)

    return out[:, :NUM_WORKER_ACTIONS]


def init_params(key):
    """Deterministic synthetic parameters (torch layout, weights transposed)."""
    # TODO(synk): torch module loads/saves a checkpoint from disk in
    # __init__/__del__; no file I/O here, so parameters are synthetic.
    ks = jax.random.split(key, 4)

    def linear(kw, fan_in, fan_out):
        w = jax.random.normal(kw, (fan_in, fan_out), jnp.float32) * 0.02
        b = jnp.zeros((1, fan_out), jnp.float32)
        return w, b

    w1, b1 = linear(ks[0], FC1_IN, 256)
    w2, b2 = linear(ks[1], 256, 128)
    w3, b3 = linear(ks[2], 128, 64)
    w4, b4 = linear(ks[3], 64, NUM_WORKER_ACTIONS)

    def bn(n):
        return jnp.ones((1, n), jnp.float32), jnp.zeros((1, n), jnp.float32)

    g1, be1 = bn(256)
    g2, be2 = bn(128)
    g3, be3 = bn(64)

    return dict(w1=w1, b1=b1, g1=g1, be1=be1,
                w2=w2, b2=b2, g2=g2, be2=be2,
                w3=w3, b3=b3, g3=g3, be3=be3,
                w4=w4, b4=b4)


def actor_head_reference(x_nchw, loc, params):
    """Pure-JAX f32 replica of the torch forward (training-mode BN)."""
    B = x_nchw.shape[0]
    ch = jnp.zeros((B, 1, MAP_H, MAP_W), x_nchw.dtype)
    ch = ch.at[jnp.arange(B), 0, loc[:, 0], loc[:, 1]].set(1.0)
    xf = jnp.concatenate([x_nchw, ch], axis=1).reshape(B, -1)

    def bn(h, g, b):
        mean = jnp.mean(h, axis=0, keepdims=True)
        var = jnp.mean((h - mean) ** 2, axis=0, keepdims=True)
        return (h - mean) * lax.rsqrt(var + BN_EPS) * g + b

    dot = functools.partial(jnp.dot, precision=lax.Precision.HIGHEST)
    h = bn(jnp.maximum(dot(xf, params["w1"]) + params["b1"], 0.0),
           params["g1"], params["be1"])
    h = bn(jnp.maximum(dot(h, params["w2"]) + params["b2"], 0.0),
           params["g2"], params["be2"])
    h = bn(jnp.maximum(dot(h, params["w3"]) + params["b3"], 0.0),
           params["g3"], params["be3"])
    logits = dot(h, params["w4"]) + params["b4"]
    return jax.nn.softmax(logits, axis=-1)


if __name__ == "__main__":
    key = jax.random.PRNGKey(0)
    k_x, k_loc, k_p = jax.random.split(key, 3)

    B = 8   # training-mode BatchNorm: a small but non-degenerate batch
    x = jax.random.normal(k_x, (B, IN_CHANNELS, MAP_H, MAP_W), jnp.float32)
    loc = jax.random.randint(k_loc, (B, 2), 0, MAP_H, dtype=jnp.int32)
    params = init_params(k_p)

    out = actor_head_forward(x, loc, params)
    out = jax.block_until_ready(out)

    assert out.shape == (B, NUM_WORKER_ACTIONS)
    assert bool(jnp.all(jnp.isfinite(out)))
    # softmax rows sum to 1 (exact f32 divide in the epilogue)
    assert bool(jnp.allclose(jnp.sum(out, axis=-1), 1.0, atol=1e-5))
    # sanity-check vs. a pure-JAX f32 replica of the torch forward (bf16 MXU
    # operands + small-batch BN statistics -> moderate tolerance)
    ref = actor_head_reference(x, loc, params)
    assert bool(jnp.allclose(out, ref, atol=5e-2))

    print("KERNEL_OK")
</pallas_src>

<mosaic_0001>
module attributes {stable_mosaic.version = 11 : i64} {
  func.func @kernel(%arg0: i32, %arg1: memref<8x1024xbf16, #tpu.memory_space<vmem>>, %arg2: memref<8x1xi32, #tpu.memory_space<vmem>>, %arg3: memref<1024x256xbf16, #tpu.memory_space<vmem>>, %arg4: memref<256x256xbf16, #tpu.memory_space<vmem>>, %arg5: memref<1x256xf32, #tpu.memory_space<vmem>>, %arg6: memref<1x256xf32, #tpu.memory_space<vmem>>, %arg7: memref<1x256xf32, #tpu.memory_space<vmem>>, %arg8: memref<256x128xbf16, #tpu.memory_space<vmem>>, %arg9: memref<1x128xf32, #tpu.memory_space<vmem>>, %arg10: memref<1x128xf32, #tpu.memory_space<vmem>>, %arg11: memref<1x128xf32, #tpu.memory_space<vmem>>, %arg12: memref<128x128xbf16, #tpu.memory_space<vmem>>, %arg13: memref<1x128xf32, #tpu.memory_space<vmem>>, %arg14: memref<1x128xf32, #tpu.memory_space<vmem>>, %arg15: memref<1x128xf32, #tpu.memory_space<vmem>>, %arg16: memref<128x128xbf16, #tpu.memory_space<vmem>>, %arg17: memref<1x128xf32, #tpu.memory_space<vmem>>, %arg18: memref<8x128xf32, #tpu.memory_space<vmem>>) attributes {dimension_semantics = [#tpu.dimension_semantics<arbitrary>], iteration_bounds = array<i64: 1>, scalar_prefetch = 0 : i64, scratch_operands = 0 : i64, tpu.core_type = #tpu.core_type<tc>, window_params = [{pipeline_mode = #tpu.pipeline_mode<synchronous>, transform_indices = @transform_0, window_bounds = array<i64: 8, 1024>}, {pipeline_mode = #tpu.pipeline_mode<synchronous>, transform_indices = @transform_1, window_bounds = array<i64: 8, 1>}, {pipeline_mode = #tpu.pipeline_mode<synchronous>, transform_indices = @transform_2, window_bounds = array<i64: 1024, 256>}, {pipeline_mode = #tpu.pipeline_mode<synchronous>, transform_indices = @transform_3, window_bounds = array<i64: 256, 256>}, {pipeline_mode = #tpu.pipeline_mode<synchronous>, transform_indices = @transform_4, window_bounds = array<i64: 1, 256>}, {pipeline_mode = #tpu.pipeline_mode<synchronous>, transform_indices = @transform_5, window_bounds = array<i64: 1, 256>}, {pipeline_mode = #tpu.pipeline_mode<synchronous>, transform_indices = @transform_6, window_bounds = array<i64: 1, 256>}, {pipeline_mode = #tpu.pipeline_mode<synchronous>, transform_indices = @transform_7, window_bounds = array<i64: 256, 128>}, {pipeline_mode = #tpu.pipeline_mode<synchronous>, transform_indices = @transform_8, window_bounds = array<i64: 1, 128>}, {pipeline_mode = #tpu.pipeline_mode<synchronous>, transform_indices = @transform_9, window_bounds = array<i64: 1, 128>}, {pipeline_mode = #tpu.pipeline_mode<synchronous>, transform_indices = @transform_10, window_bounds = array<i64: 1, 128>}, {pipeline_mode = #tpu.pipeline_mode<synchronous>, transform_indices = @transform_11, window_bounds = array<i64: 128, 128>}, {pipeline_mode = #tpu.pipeline_mode<synchronous>, transform_indices = @transform_12, window_bounds = array<i64: 1, 128>}, {pipeline_mode = #tpu.pipeline_mode<synchronous>, transform_indices = @transform_13, window_bounds = array<i64: 1, 128>}, {pipeline_mode = #tpu.pipeline_mode<synchronous>, transform_indices = @transform_14, window_bounds = array<i64: 1, 128>}, {pipeline_mode = #tpu.pipeline_mode<synchronous>, transform_indices = @transform_15, window_bounds = array<i64: 128, 128>}, {pipeline_mode = #tpu.pipeline_mode<synchronous>, transform_indices = @transform_16, window_bounds = array<i64: 1, 128>}, {pipeline_mode = #tpu.pipeline_mode<synchronous>, transform_indices = @transform_17, window_bounds = array<i64: 8, 128>}]} {
    %c0 = arith.constant 0 : index
    %c0_0 = arith.constant 0 : index
    %0 = vector.load %arg1[%c0, %c0_0] : memref<8x1024xbf16, #tpu.memory_space<vmem>>, vector<8x1024xbf16>
    %1 = tpu.iota {dimensions = array<i32: 1>} : vector<8x256xi32>
    %c0_1 = arith.constant 0 : index
    %c0_2 = arith.constant 0 : index
    %2 = vector.load %arg2[%c0_1, %c0_2] : memref<8x1xi32, #tpu.memory_space<vmem>>, vector<8x1xi32>
    %3 = vector.broadcast %2 : vector<8x1xi32> to vector<8x256xi32>
    %4 = arith.cmpi eq, %1, %3 : vector<8x256xi32>
    %cst = arith.constant 1.000000e+00 : f32
    %cst_3 = arith.constant 0.000000e+00 : f32
    %5 = vector.broadcast %cst : f32 to vector<8x256xf32>
    %6 = vector.broadcast %cst_3 : f32 to vector<8x256xf32>
    %7 = arith.select %4, %5, %6 : vector<8x256xi1>, vector<8x256xf32>
    %8 = arith.truncf %7 : vector<8x256xf32> to vector<8x256xbf16>
    %c0_4 = arith.constant 0 : index
    %c0_5 = arith.constant 0 : index
    %9 = vector.load %arg3[%c0_4, %c0_5] : memref<1024x256xbf16, #tpu.memory_space<vmem>>, vector<1024x256xbf16>
    %cst_6 = arith.constant dense<0.000000e+00> : vector<8x256xf32>
    %10 = tpu.matmul %0, %9, %cst_6 {dimension_numbers = #tpu.dot_dimension_numbers<[1], [0], [0], [1], [0, 0, 1, 1], [], []>} : vector<8x1024xbf16>, vector<1024x256xbf16>, vector<8x256xf32> -> vector<8x256xf32>
    %c0_7 = arith.constant 0 : index
    %c0_8 = arith.constant 0 : index
    %11 = vector.load %arg4[%c0_7, %c0_8] : memref<256x256xbf16, #tpu.memory_space<vmem>>, vector<256x256xbf16>
    %cst_9 = arith.constant dense<0.000000e+00> : vector<8x256xf32>
    %12 = tpu.matmul %8, %11, %cst_9 {dimension_numbers = #tpu.dot_dimension_numbers<[1], [0], [0], [1], [0, 0, 1, 1], [], []>} : vector<8x256xbf16>, vector<256x256xbf16>, vector<8x256xf32> -> vector<8x256xf32>
    %13 = arith.addf %10, %12 : vector<8x256xf32>
    %c0_10 = arith.constant 0 : index
    %c0_11 = arith.constant 0 : index
    %14 = vector.load %arg5[%c0_10, %c0_11] : memref<1x256xf32, #tpu.memory_space<vmem>>, vector<1x256xf32>
    %15 = vector.broadcast %14 : vector<1x256xf32> to vector<8x256xf32>
    %16 = arith.addf %13, %15 : vector<8x256xf32>
    %cst_12 = arith.constant 0.000000e+00 : f32
    %17 = vector.broadcast %cst_12 : f32 to vector<8x256xf32>
    %18 = arith.maximumf %16, %17 : vector<8x256xf32>
    %cst_13 = arith.constant dense<0.000000e+00> : vector<256xf32>
    %19 = vector.multi_reduction <add>, %18, %cst_13 [0] : vector<8x256xf32> to vector<256xf32>
    %20 = vector.shape_cast %19 : vector<256xf32> to vector<1x256xf32>
    %cst_14 = arith.constant 1.250000e-01 : f32
    %21 = vector.broadcast %cst_14 : f32 to vector<1x256xf32>
    %22 = arith.mulf %20, %21 : vector<1x256xf32>
    %23 = vector.broadcast %22 : vector<1x256xf32> to vector<8x256xf32>
    %24 = arith.subf %18, %23 : vector<8x256xf32>
    %25 = arith.mulf %24, %24 : vector<8x256xf32>
    %cst_15 = arith.constant dense<0.000000e+00> : vector<256xf32>
    %26 = vector.multi_reduction <add>, %25, %cst_15 [0] : vector<8x256xf32> to vector<256xf32>
    %27 = vector.shape_cast %26 : vector<256xf32> to vector<1x256xf32>
    %cst_16 = arith.constant 1.250000e-01 : f32
    %28 = vector.broadcast %cst_16 : f32 to vector<1x256xf32>
    %29 = arith.mulf %27, %28 : vector<1x256xf32>
    %c0_17 = arith.constant 0 : index
    %c0_18 = arith.constant 0 : index
    %30 = vector.load %arg6[%c0_17, %c0_18] : memref<1x256xf32, #tpu.memory_space<vmem>>, vector<1x256xf32>
    %cst_19 = arith.constant 9.99999974E-6 : f32
    %31 = vector.broadcast %cst_19 : f32 to vector<1x256xf32>
    %32 = arith.addf %29, %31 : vector<1x256xf32>
    %33 = math.rsqrt %32 : vector<1x256xf32>
    %34 = arith.mulf %30, %33 : vector<1x256xf32>
    %35 = vector.broadcast %34 : vector<1x256xf32> to vector<8x256xf32>
    %36 = arith.mulf %24, %35 : vector<8x256xf32>
    %c0_20 = arith.constant 0 : index
    %c0_21 = arith.constant 0 : index
    %37 = vector.load %arg7[%c0_20, %c0_21] : memref<1x256xf32, #tpu.memory_space<vmem>>, vector<1x256xf32>
    %38 = vector.broadcast %37 : vector<1x256xf32> to vector<8x256xf32>
    %39 = arith.addf %36, %38 : vector<8x256xf32>
    %40 = arith.truncf %39 : vector<8x256xf32> to vector<8x256xbf16>
    %c0_22 = arith.constant 0 : index
    %c0_23 = arith.constant 0 : index
    %41 = vector.load %arg8[%c0_22, %c0_23] : memref<256x128xbf16, #tpu.memory_space<vmem>>, vector<256x128xbf16>
    %cst_24 = arith.constant dense<0.000000e+00> : vector<8x128xf32>
    %42 = tpu.matmul %40, %41, %cst_24 {dimension_numbers = #tpu.dot_dimension_numbers<[1], [0], [0], [1], [0, 0, 1, 1], [], []>} : vector<8x256xbf16>, vector<256x128xbf16>, vector<8x128xf32> -> vector<8x128xf32>
    %c0_25 = arith.constant 0 : index
    %c0_26 = arith.constant 0 : index
    %43 = vector.load %arg9[%c0_25, %c0_26] : memref<1x128xf32, #tpu.memory_space<vmem>>, vector<1x128xf32>
    %44 = vector.broadcast %43 : vector<1x128xf32> to vector<8x128xf32>
    %45 = arith.addf %42, %44 : vector<8x128xf32>
    %cst_27 = arith.constant 0.000000e+00 : f32
    %46 = vector.broadcast %cst_27 : f32 to vector<8x128xf32>
    %47 = arith.maximumf %45, %46 : vector<8x128xf32>
    %cst_28 = arith.constant dense<0.000000e+00> : vector<128xf32>
    %48 = vector.multi_reduction <add>, %47, %cst_28 [0] : vector<8x128xf32> to vector<128xf32>
    %49 = vector.shape_cast %48 : vector<128xf32> to vector<1x128xf32>
    %cst_29 = arith.constant 1.250000e-01 : f32
    %50 = vector.broadcast %cst_29 : f32 to vector<1x128xf32>
    %51 = arith.mulf %49, %50 : vector<1x128xf32>
    %52 = vector.broadcast %51 : vector<1x128xf32> to vector<8x128xf32>
    %53 = arith.subf %47, %52 : vector<8x128xf32>
    %54 = arith.mulf %53, %53 : vector<8x128xf32>
    %cst_30 = arith.constant dense<0.000000e+00> : vector<128xf32>
    %55 = vector.multi_reduction <add>, %54, %cst_30 [0] : vector<8x128xf32> to vector<128xf32>
    %56 = vector.shape_cast %55 : vector<128xf32> to vector<1x128xf32>
    %cst_31 = arith.constant 1.250000e-01 : f32
    %57 = vector.broadcast %cst_31 : f32 to vector<1x128xf32>
    %58 = arith.mulf %56, %57 : vector<1x128xf32>
    %c0_32 = arith.constant 0 : index
    %c0_33 = arith.constant 0 : index
    %59 = vector.load %arg10[%c0_32, %c0_33] : memref<1x128xf32, #tpu.memory_space<vmem>>, vector<1x128xf32>
    %cst_34 = arith.constant 9.99999974E-6 : f32
    %60 = vector.broadcast %cst_34 : f32 to vector<1x128xf32>
    %61 = arith.addf %58, %60 : vector<1x128xf32>
    %62 = math.rsqrt %61 : vector<1x128xf32>
    %63 = arith.mulf %59, %62 : vector<1x128xf32>
    %64 = vector.broadcast %63 : vector<1x128xf32> to vector<8x128xf32>
    %65 = arith.mulf %53, %64 : vector<8x128xf32>
    %c0_35 = arith.constant 0 : index
    %c0_36 = arith.constant 0 : index
    %66 = vector.load %arg11[%c0_35, %c0_36] : memref<1x128xf32, #tpu.memory_space<vmem>>, vector<1x128xf32>
    %67 = vector.broadcast %66 : vector<1x128xf32> to vector<8x128xf32>
    %68 = arith.addf %65, %67 : vector<8x128xf32>
    %69 = arith.truncf %68 : vector<8x128xf32> to vector<8x128xbf16>
    %c0_37 = arith.constant 0 : index
    %c0_38 = arith.constant 0 : index
    %70 = vector.load %arg12[%c0_37, %c0_38] : memref<128x128xbf16, #tpu.memory_space<vmem>>, vector<128x128xbf16>
    %cst_39 = arith.constant dense<0.000000e+00> : vector<8x128xf32>
    %71 = tpu.matmul %69, %70, %cst_39 {dimension_numbers = #tpu.dot_dimension_numbers<[1], [0], [0], [1], [0, 0, 1, 1], [], []>} : vector<8x128xbf16>, vector<128x128xbf16>, vector<8x128xf32> -> vector<8x128xf32>
    %c0_40 = arith.constant 0 : index
    %c0_41 = arith.constant 0 : index
    %72 = vector.load %arg13[%c0_40, %c0_41] : memref<1x128xf32, #tpu.memory_space<vmem>>, vector<1x128xf32>
    %73 = vector.broadcast %72 : vector<1x128xf32> to vector<8x128xf32>
    %74 = arith.addf %71, %73 : vector<8x128xf32>
    %cst_42 = arith.constant 0.000000e+00 : f32
    %75 = vector.broadcast %cst_42 : f32 to vector<8x128xf32>
    %76 = arith.maximumf %74, %75 : vector<8x128xf32>
    %cst_43 = arith.constant dense<0.000000e+00> : vector<128xf32>
    %77 = vector.multi_reduction <add>, %76, %cst_43 [0] : vector<8x128xf32> to vector<128xf32>
    %78 = vector.shape_cast %77 : vector<128xf32> to vector<1x128xf32>
    %cst_44 = arith.constant 1.250000e-01 : f32
    %79 = vector.broadcast %cst_44 : f32 to vector<1x128xf32>
    %80 = arith.mulf %78, %79 : vector<1x128xf32>
    %81 = vector.broadcast %80 : vector<1x128xf32> to vector<8x128xf32>
    %82 = arith.subf %76, %81 : vector<8x128xf32>
    %83 = arith.mulf %82, %82 : vector<8x128xf32>
    %cst_45 = arith.constant dense<0.000000e+00> : vector<128xf32>
    %84 = vector.multi_reduction <add>, %83, %cst_45 [0] : vector<8x128xf32> to vector<128xf32>
    %85 = vector.shape_cast %84 : vector<128xf32> to vector<1x128xf32>
    %cst_46 = arith.constant 1.250000e-01 : f32
    %86 = vector.broadcast %cst_46 : f32 to vector<1x128xf32>
    %87 = arith.mulf %85, %86 : vector<1x128xf32>
    %c0_47 = arith.constant 0 : index
    %c0_48 = arith.constant 0 : index
    %88 = vector.load %arg14[%c0_47, %c0_48] : memref<1x128xf32, #tpu.memory_space<vmem>>, vector<1x128xf32>
    %cst_49 = arith.constant 9.99999974E-6 : f32
    %89 = vector.broadcast %cst_49 : f32 to vector<1x128xf32>
    %90 = arith.addf %87, %89 : vector<1x128xf32>
    %91 = math.rsqrt %90 : vector<1x128xf32>
    %92 = arith.mulf %88, %91 : vector<1x128xf32>
    %93 = vector.broadcast %92 : vector<1x128xf32> to vector<8x128xf32>
    %94 = arith.mulf %82, %93 : vector<8x128xf32>
    %c0_50 = arith.constant 0 : index
    %c0_51 = arith.constant 0 : index
    %95 = vector.load %arg15[%c0_50, %c0_51] : memref<1x128xf32, #tpu.memory_space<vmem>>, vector<1x128xf32>
    %96 = vector.broadcast %95 : vector<1x128xf32> to vector<8x128xf32>
    %97 = arith.addf %94, %96 : vector<8x128xf32>
    %98 = arith.truncf %97 : vector<8x128xf32> to vector<8x128xbf16>
    %c0_52 = arith.constant 0 : index
    %c0_53 = arith.constant 0 : index
    %99 = vector.load %arg16[%c0_52, %c0_53] : memref<128x128xbf16, #tpu.memory_space<vmem>>, vector<128x128xbf16>
    %cst_54 = arith.constant dense<0.000000e+00> : vector<8x128xf32>
    %100 = tpu.matmul %98, %99, %cst_54 {dimension_numbers = #tpu.dot_dimension_numbers<[1], [0], [0], [1], [0, 0, 1, 1], [], []>} : vector<8x128xbf16>, vector<128x128xbf16>, vector<8x128xf32> -> vector<8x128xf32>
    %c0_55 = arith.constant 0 : index
    %c0_56 = arith.constant 0 : index
    %101 = vector.load %arg17[%c0_55, %c0_56] : memref<1x128xf32, #tpu.memory_space<vmem>>, vector<1x128xf32>
    %102 = vector.broadcast %101 : vector<1x128xf32> to vector<8x128xf32>
    %103 = arith.addf %100, %102 : vector<8x128xf32>
    %cst_57 = arith.constant dense<0xFF800000> : vector<8xf32>
    %104 = vector.multi_reduction <maximumf>, %103, %cst_57 [1] : vector<8x128xf32> to vector<8xf32>
    %105 = vector.shape_cast %104 : vector<8xf32> to vector<8x1xf32>
    %106 = vector.broadcast %105 : vector<8x1xf32> to vector<8x128xf32>
    %107 = arith.subf %103, %106 : vector<8x128xf32>
    %108 = math.exp %107 : vector<8x128xf32>
    %cst_58 = arith.constant dense<0.000000e+00> : vector<8xf32>
    %109 = vector.multi_reduction <add>, %108, %cst_58 [1] : vector<8x128xf32> to vector<8xf32>
    %110 = vector.shape_cast %109 : vector<8xf32> to vector<8x1xf32>
    %111 = vector.broadcast %110 : vector<8x1xf32> to vector<8x128xf32>
    %112 = arith.divf %108, %111 : vector<8x128xf32>
    %c0_59 = arith.constant 0 : index
    %c0_60 = arith.constant 0 : index
    %113 = vector.load %arg18[%c0_59, %c0_60] : memref<8x128xf32, #tpu.memory_space<vmem>>, vector<8x128xf32>
    tpu.vector_store %arg18[%c0_59, %c0_60], %112 {strides = array<i32>} : memref<8x128xf32, #tpu.memory_space<vmem>>, vector<8x128xf32>,
    return
  }
  func.func @transform_0(%arg0: i32) -> (i32, i32) {
    %c0_i32 = arith.constant 0 : i32
    %c0_i32_0 = arith.constant 0 : i32
    %c0_i32_1 = arith.constant 0 : i32
    return %c0_i32, %c0_i32_0 : i32, i32
  }
  func.func @transform_1(%arg0: i32) -> (i32, i32) {
    %c0_i32 = arith.constant 0 : i32
    %c0_i32_0 = arith.constant 0 : i32
    %c0_i32_1 = arith.constant 0 : i32
    return %c0_i32, %c0_i32_0 : i32, i32
  }
  func.func @transform_2(%arg0: i32) -> (i32, i32) {
    %c0_i32 = arith.constant 0 : i32
    %c0_i32_0 = arith.constant 0 : i32
    %c0_i32_1 = arith.constant 0 : i32
    return %c0_i32, %c0_i32_0 : i32, i32
  }
  func.func @transform_3(%arg0: i32) -> (i32, i32) {
    %c0_i32 = arith.constant 0 : i32
    %c0_i32_0 = arith.constant 0 : i32
    %c0_i32_1 = arith.constant 0 : i32
    return %c0_i32, %c0_i32_0 : i32, i32
  }
  func.func @transform_4(%arg0: i32) -> (i32, i32) {
    %c0_i32 = arith.constant 0 : i32
    %c0_i32_0 = arith.constant 0 : i32
    %c0_i32_1 = arith.constant 0 : i32
    return %c0_i32, %c0_i32_0 : i32, i32
  }
  func.func @transform_5(%arg0: i32) -> (i32, i32) {
    %c0_i32 = arith.constant 0 : i32
    %c0_i32_0 = arith.constant 0 : i32
    %c0_i32_1 = arith.constant 0 : i32
    return %c0_i32, %c0_i32_0 : i32, i32
  }
  func.func @transform_6(%arg0: i32) -> (i32, i32) {
    %c0_i32 = arith.constant 0 : i32
    %c0_i32_0 = arith.constant 0 : i32
    %c0_i32_1 = arith.constant 0 : i32
    return %c0_i32, %c0_i32_0 : i32, i32
  }
  func.func @transform_7(%arg0: i32) -> (i32, i32) {
    %c0_i32 = arith.constant 0 : i32
    %c0_i32_0 = arith.constant 0 : i32
    %c0_i32_1 = arith.constant 0 : i32
    return %c0_i32, %c0_i32_0 : i32, i32
  }
  func.func @transform_8(%arg0: i32) -> (i32, i32) {
    %c0_i32 = arith.constant 0 : i32
    %c0_i32_0 = arith.constant 0 : i32
    %c0_i32_1 = arith.constant 0 : i32
    return %c0_i32, %c0_i32_0 : i32, i32
  }
  func.func @transform_9(%arg0: i32) -> (i32, i32) {
    %c0_i32 = arith.constant 0 : i32
    %c0_i32_0 = arith.constant 0 : i32
    %c0_i32_1 = arith.constant 0 : i32
    return %c0_i32, %c0_i32_0 : i32, i32
  }
  func.func @transform_10(%arg0: i32) -> (i32, i32) {
    %c0_i32 = arith.constant 0 : i32
    %c0_i32_0 = arith.constant 0 : i32
    %c0_i32_1 = arith.constant 0 : i32
    return %c0_i32, %c0_i32_0 : i32, i32
  }
  func.func @transform_11(%arg0: i32) -> (i32, i32) {
    %c0_i32 = arith.constant 0 : i32
    %c0_i32_0 = arith.constant 0 : i32
    %c0_i32_1 = arith.constant 0 : i32
    return %c0_i32, %c0_i32_0 : i32, i32
  }
  func.func @transform_12(%arg0: i32) -> (i32, i32) {
    %c0_i32 = arith.constant 0 : i32
    %c0_i32_0 = arith.constant 0 : i32
    %c0_i32_1 = arith.constant 0 : i32
    return %c0_i32, %c0_i32_0 : i32, i32
  }
  func.func @transform_13(%arg0: i32) -> (i32, i32) {
    %c0_i32 = arith.constant 0 : i32
    %c0_i32_0 = arith.constant 0 : i32
    %c0_i32_1 = arith.constant 0 : i32
    return %c0_i32, %c0_i32_0 : i32, i32
  }
  func.func @transform_14(%arg0: i32) -> (i32, i32) {
    %c0_i32 = arith.constant 0 : i32
    %c0_i32_0 = arith.constant 0 : i32
    %c0_i32_1 = arith.constant 0 : i32
    return %c0_i32, %c0_i32_0 : i32, i32
  }
  func.func @transform_15(%arg0: i32) -> (i32, i32) {
    %c0_i32 = arith.constant 0 : i32
    %c0_i32_0 = arith.constant 0 : i32
    %c0_i32_1 = arith.constant 0 : i32
    return %c0_i32, %c0_i32_0 : i32, i32
  }
  func.func @transform_16(%arg0: i32) -> (i32, i32) {
    %c0_i32 = arith.constant 0 : i32
    %c0_i32_0 = arith.constant 0 : i32
    %c0_i32_1 = arith.constant 0 : i32
    return %c0_i32, %c0_i32_0 : i32, i32
  }
  func.func @transform_17(%arg0: i32) -> (i32, i32) {
    %c0_i32 = arith.constant 0 : i32
    %c0_i32_0 = arith.constant 0 : i32
    %c0_i32_1 = arith.constant 0 : i32
    return %c0_i32, %c0_i32_0 : i32, i32
  }
}

</mosaic_0001>

<llo_original>
// kernel: tpu_custom_call.1
$region0: #{tpu_custom_call.1}
  #allocation0 [shape = 'u32[]', space=smem, size = 0x4, offset = 0x4, fixed_abs, tag = 'smem constant byte address 0x4 - core index']
  #allocation1 [shape = 'u32[144,128]{1,0:T(1,128)}', space=vmem, size = 0x12000, scoped, tag = 'internal scratch']
  %s0 = inlined_call_operand.hbm [shape: bf16[8,1024], index: 0, kind: input, shape index: {}]
  %s1 = inlined_call_operand.vmem [shape: s32[8,1], index: 1, kind: input, shape index: {}]
  %s2 = inlined_call_operand.hbm [shape: bf16[1024,256], index: 2, kind: input, shape index: {}]
  %s3 = inlined_call_operand.hbm [shape: bf16[256,256], index: 3, kind: input, shape index: {}]
  %s4 = inlined_call_operand.hbm [shape: f32[1,256], index: 4, kind: input, shape index: {}]
  %s5 = inlined_call_operand.hbm [shape: f32[1,256], index: 5, kind: input, shape index: {}]
  %s6 = inlined_call_operand.hbm [shape: f32[1,256], index: 6, kind: input, shape index: {}]
  %s7 = inlined_call_operand.hbm [shape: bf16[256,128], index: 7, kind: input, shape index: {}]
  %s8 = inlined_call_operand.vmem [shape: f32[1,128], index: 8, kind: input, shape index: {}]
  %s9 = inlined_call_operand.hbm [shape: f32[1,128], index: 9, kind: input, shape index: {}]
  %s10 = inlined_call_operand.hbm [shape: f32[1,128], index: 10, kind: input, shape index: {}]
  %s11 = inlined_call_operand.hbm [shape: bf16[128,128], index: 11, kind: input, shape index: {}]
  %s12 = inlined_call_operand.hbm [shape: f32[1,128], index: 12, kind: input, shape index: {}]
  %s13 = inlined_call_operand.hbm [shape: f32[1,128], index: 13, kind: input, shape index: {}]
  %s14 = inlined_call_operand.hbm [shape: f32[1,128], index: 14, kind: input, shape index: {}]
  %s15 = inlined_call_operand.vmem [shape: bf16[128,128], index: 15, kind: input, shape index: {}]
  %s16 = inlined_call_operand.vmem [shape: f32[1,128], index: 16, kind: input, shape index: {}]
  %s17 = inlined_call_operand.hbm [shape: f32[8,128], index: 17, kind: output, shape index: {}]
  %s18 = sld [smem:[#allocation0]]
  $region130: #{tpu_custom_call.1} parent=0
    _
  %s20 = ssub.s32 1, %s18
  %s21 = scalar_select 0, %s20, %s18
  $region1: #{tpu_custom_call.1} parent=0
    #allocation2 [shape = 'u8[16384]{0}', space=vmem, size = 0x4000, scoped, tag = 'input window, operand 0, single buffered']
    #allocation3 [shape = 's32[1]{0}', space=sflag, size = 0x4, scoped, tag = 'scoped memory for tpu_custom_call.1']
    #allocation4 [shape = 's32[1]{0}', space=sflag, size = 0x4, scoped, tag = 'scoped memory for tpu_custom_call.1']
    #allocation5 [shape = 'u8[524288]{0}', space=vmem, size = 0x80000, scoped, tag = 'input window, operand 2, single buffered']
    #allocation6 [shape = 's32[1]{0}', space=sflag, size = 0x4, scoped, tag = 'scoped memory for tpu_custom_call.1']
    #allocation7 [shape = 'u8[131072]{0}', space=vmem, size = 0x20000, scoped, tag = 'input window, operand 3, single buffered']
    #allocation8 [shape = 'u8[1024]{0}', space=vmem, size = 0x400, scoped, tag = 'input window, operand 4, single buffered']
    #allocation9 [shape = 's32[1]{0}', space=sflag, size = 0x4, scoped, tag = 'scoped memory for tpu_custom_call.1']
    #allocation10 [shape = 'u8[1024]{0}', space=vmem, size = 0x400, scoped, tag = 'input window, operand 5, single buffered']
    #allocation11 [shape = 'u8[1024]{0}', space=vmem, size = 0x400, scoped, tag = 'input window, operand 6, single buffered']
    #allocation12 [shape = 's32[1]{0}', space=sflag, size = 0x4, scoped, tag = 'scoped memory for tpu_custom_call.1']
    #allocation13 [shape = 'u8[65536]{0}', space=vmem, size = 0x10000, scoped, tag = 'input window, operand 7, single buffered']
    #allocation14 [shape = 'u8[512]{0}', space=vmem, size = 0x400, scoped, tag = 'input window, operand 9, single buffered']
    #allocation15 [shape = 's32[1]{0}', space=sflag, size = 0x4, scoped, tag = 'scoped memory for tpu_custom_call.1']
    #allocation16 [shape = 'u8[512]{0}', space=vmem, size = 0x400, scoped, tag = 'input window, operand 10, single buffered']
    #allocation17 [shape = 'u8[32768]{0}', space=vmem, size = 0x8000, scoped, tag = 'input window, operand 11, single buffered']
    #allocation18 [shape = 's32[1]{0}', space=sflag, size = 0x4, scoped, tag = 'scoped memory for tpu_custom_call.1']
    #allocation19 [shape = 'u8[512]{0}', space=vmem, size = 0x400, scoped, tag = 'input window, operand 12, single buffered']
    #allocation20 [shape = 'u8[512]{0}', space=vmem, size = 0x400, scoped, tag = 'input window, operand 13, single buffered']
    #allocation21 [shape = 's32[1]{0}', space=sflag, size = 0x4, scoped, tag = 'scoped memory for tpu_custom_call.1']
    #allocation22 [shape = 'u8[512]{0}', space=vmem, size = 0x400, scoped, tag = 'input window, operand 14, single buffered']
    #allocation23 [shape = 'u8[4096]{0}', space=vmem, size = 0x1000, scoped, tag = 'output window, operand 0, single buffered']
    %22 = vsyncpa [#allocation3], 0
    %23 = vsyncpa [#allocation6], 0
    %24 = vsyncpa [#allocation9], 0
    %25 = vsyncpa [#allocation12], 0
    %26 = vsyncpa [#allocation15], 0
    %27 = vsyncpa [#allocation18], 0
    %28 = vsyncpa [#allocation21], 0
    %29 = vsyncpa [#allocation4], 0
    // Predicated region
    $region2: #{tpu_custom_call.1} parent=1 // pred_check
      _
    $region3: #{tpu_custom_call.1} parent=1 // pred_check_branch
      %31 = sbr.rel (0) target = $region5
    $region4: #{tpu_custom_call.1} parent=1 // pred_region
      %s33 = ssub.s32 512, 512
      %34 = vsyncadd [#allocation3], %s33
      %s36 = sshll.u32 [#allocation2], 4
      %s37 = int_to_ptr.vmem [resolvable:$true] %s36
      %39 = dma.hbm_to_vmem [thread:$0]  %s0, 512, %s37, [#allocation3]
    $region5: #{tpu_custom_call.1} parent=1 // pred_fallthru
      _
    // Predicated region
    $region6: #{tpu_custom_call.1} parent=1 // pred_check
      _
    $region7: #{tpu_custom_call.1} parent=1 // pred_check_branch
      %41 = sbr.rel (0) target = $region9
    $region8: #{tpu_custom_call.1} parent=1 // pred_region
      _
    $region9: #{tpu_custom_call.1} parent=1 // pred_fallthru
      _
    // Predicated region
    $region10: #{tpu_custom_call.1} parent=1 // pred_check
      _
    $region11: #{tpu_custom_call.1} parent=1 // pred_check_branch
      %43 = sbr.rel (0) target = $region13
    $region12: #{tpu_custom_call.1} parent=1 // pred_region
      %s45 = ssub.s32 16384, 16384
      %46 = vsyncadd [#allocation6], %s45
      %s47 = sshll.u32 [#allocation5], 4
      %s48 = int_to_ptr.vmem [resolvable:$true] %s47
      %53 = dma.hbm_to_vmem [thread:$0]  %s2, 16384, %s48, [#allocation6], 128, 128, 8
    $region13: #{tpu_custom_call.1} parent=1 // pred_fallthru
      _
    // Predicated region
    $region14: #{tpu_custom_call.1} parent=1 // pred_check
      _
    $region15: #{tpu_custom_call.1} parent=1 // pred_check_branch
      %55 = sbr.rel (0) target = $region17
    $region16: #{tpu_custom_call.1} parent=1 // pred_region
      %s57 = ssub.s32 4096, 4096
      %58 = vsyncadd [#allocation6], %s57
      %s59 = sshll.u32 [#allocation7], 4
      %s60 = int_to_ptr.vmem [resolvable:$true] %s59
      %65 = dma.hbm_to_vmem [thread:$0]  %s3, 4096, %s60, [#allocation6], 128, 128, 8
    $region17: #{tpu_custom_call.1} parent=1 // pred_fallthru
      _
    // Predicated region
    $region18: #{tpu_custom_call.1} parent=1 // pred_check
      _
    $region19: #{tpu_custom_call.1} parent=1 // pred_check_branch
      %67 = sbr.rel (0) target = $region21
    $region20: #{tpu_custom_call.1} parent=1 // pred_region
      %s69 = ssub.s32 32, 32
      %70 = vsyncadd [#allocation9], %s69
      %s72 = sshll.u32 [#allocation8], 4
      %s73 = int_to_ptr.vmem [resolvable:$true] %s72
      %75 = dma.hbm_to_vmem [thread:$0]  %s4, 32, %s73, [#allocation9]
    $region21: #{tpu_custom_call.1} parent=1 // pred_fallthru
      _
    // Predicated region
    $region22: #{tpu_custom_call.1} parent=1 // pred_check
      _
    $region23: #{tpu_custom_call.1} parent=1 // pred_check_branch
      %77 = sbr.rel (0) target = $region25
    $region24: #{tpu_custom_call.1} parent=1 // pred_region
      %s79 = ssub.s32 32, 32
      %80 = vsyncadd [#allocation9], %s79
      %s82 = sshll.u32 [#allocation10], 4
      %s83 = int_to_ptr.vmem [resolvable:$true] %s82
      %85 = dma.hbm_to_vmem [thread:$0]  %s5, 32, %s83, [#allocation9]
    $region25: #{tpu_custom_call.1} parent=1 // pred_fallthru
      _
    // Predicated region
    $region26: #{tpu_custom_call.1} parent=1 // pred_check
      _
    $region27: #{tpu_custom_call.1} parent=1 // pred_check_branch
      %87 = sbr.rel (0) target = $region29
    $region28: #{tpu_custom_call.1} parent=1 // pred_region
      %s89 = ssub.s32 32, 32
      %90 = vsyncadd [#allocation12], %s89
      %s92 = sshll.u32 [#allocation11], 4
      %s93 = int_to_ptr.vmem [resolvable:$true] %s92
      %95 = dma.hbm_to_vmem [thread:$0]  %s6, 32, %s93, [#allocation12]
    $region29: #{tpu_custom_call.1} parent=1 // pred_fallthru
      _
    // Predicated region
    $region30: #{tpu_custom_call.1} parent=1 // pred_check
      _
    $region31: #{tpu_custom_call.1} parent=1 // pred_check_branch
      %97 = sbr.rel (0) target = $region33
    $region32: #{tpu_custom_call.1} parent=1 // pred_region
      %s99 = ssub.s32 2048, 2048
      %100 = vsyncadd [#allocation12], %s99
      %s101 = sshll.u32 [#allocation13], 4
      %s102 = int_to_ptr.vmem [resolvable:$true] %s101
      %107 = dma.hbm_to_vmem [thread:$0]  %s7, 2048, %s102, [#allocation12], 64, 64, 4
    $region33: #{tpu_custom_call.1} parent=1 // pred_fallthru
      _
    // Predicated region
    $region34: #{tpu_custom_call.1} parent=1 // pred_check
      _
    $region35: #{tpu_custom_call.1} parent=1 // pred_check_branch
      %109 = sbr.rel (0) target = $region37
    $region36: #{tpu_custom_call.1} parent=1 // pred_region
      _
    $region37: #{tpu_custom_call.1} parent=1 // pred_fallthru
      _
    // Predicated region
    $region38: #{tpu_custom_call.1} parent=1 // pred_check
      _
    $region39: #{tpu_custom_call.1} parent=1 // pred_check_branch
      %111 = sbr.rel (0) target = $region41
    $region40: #{tpu_custom_call.1} parent=1 // pred_region
      %s113 = ssub.s32 16, 16
      %114 = vsyncadd [#allocation15], %s113
      %s116 = sshll.u32 [#allocation14], 4
      %s117 = int_to_ptr.vmem [resolvable:$true] %s116
      %119 = dma.hbm_to_vmem [thread:$0]  %s9, 16, %s117, [#allocation15]
    $region41: #{tpu_custom_call.1} parent=1 // pred_fallthru
      _
    // Predicated region
    $region42: #{tpu_custom_call.1} parent=1 // pred_check
      _
    $region43: #{tpu_custom_call.1} parent=1 // pred_check_branch
      %121 = sbr.rel (0) target = $region45
    $region44: #{tpu_custom_call.1} parent=1 // pred_region
      %s123 = ssub.s32 16, 16
      %124 = vsyncadd [#allocation15], %s123
      %s126 = sshll.u32 [#allocation16], 4
      %s127 = int_to_ptr.vmem [resolvable:$true] %s126
      %129 = dma.hbm_to_vmem [thread:$0]  %s10, 16, %s127, [#allocation15]
    $region45: #{tpu_custom_call.1} parent=1 // pred_fallthru
      _
    // Predicated region
    $region46: #{tpu_custom_call.1} parent=1 // pred_check
      _
    $region47: #{tpu_custom_call.1} parent=1 // pred_check_branch
      %131 = sbr.rel (0) target = $region49
    $region48: #{tpu_custom_call.1} parent=1 // pred_region
      %s133 = ssub.s32 1024, 1024
      %134 = vsyncadd [#allocation18], %s133
      %s135 = sshll.u32 [#allocation17], 4
      %s136 = int_to_ptr.vmem [resolvable:$true] %s135
      %141 = dma.hbm_to_vmem [thread:$0]  %s11, 1024, %s136, [#allocation18], 64, 64, 4
    $region49: #{tpu_custom_call.1} parent=1 // pred_fallthru
      _
    // Predicated region
    $region50: #{tpu_custom_call.1} parent=1 // pred_check
      _
    $region51: #{tpu_custom_call.1} parent=1 // pred_check_branch
      %143 = sbr.rel (0) target = $region53
    $region52: #{tpu_custom_call.1} parent=1 // pred_region
      %s145 = ssub.s32 16, 16
      %146 = vsyncadd [#allocation18], %s145
      %s148 = sshll.u32 [#allocation19], 4
      %s149 = int_to_ptr.vmem [resolvable:$true] %s148
      %151 = dma.hbm_to_vmem [thread:$0]  %s12, 16, %s149, [#allocation18]
    $region53: #{tpu_custom_call.1} parent=1 // pred_fallthru
      _
    // Predicated region
    $region54: #{tpu_custom_call.1} parent=1 // pred_check
      _
    $region55: #{tpu_custom_call.1} parent=1 // pred_check_branch
      %153 = sbr.rel (0) target = $region57
    $region56: #{tpu_custom_call.1} parent=1 // pred_region
      %s155 = ssub.s32 16, 16
      %156 = vsyncadd [#allocation21], %s155
      %s158 = sshll.u32 [#allocation20], 4
      %s159 = int_to_ptr.vmem [resolvable:$true] %s158
      %161 = dma.hbm_to_vmem [thread:$0]  %s13, 16, %s159, [#allocation21]
    $region57: #{tpu_custom_call.1} parent=1 // pred_fallthru
      _
    // Predicated region
    $region58: #{tpu_custom_call.1} parent=1 // pred_check
      _
    $region59: #{tpu_custom_call.1} parent=1 // pred_check_branch
      %163 = sbr.rel (0) target = $region61
    $region60: #{tpu_custom_call.1} parent=1 // pred_region
      %s165 = ssub.s32 16, 16
      %166 = vsyncadd [#allocation21], %s165
      %s168 = sshll.u32 [#allocation22], 4
      %s169 = int_to_ptr.vmem [resolvable:$true] %s168
      %171 = dma.hbm_to_vmem [thread:$0]  %s14, 16, %s169, [#allocation21]
    $region61: #{tpu_custom_call.1} parent=1 // pred_fallthru
      _
    // Predicated region
    $region62: #{tpu_custom_call.1} parent=1 // pred_check
      _
    $region63: #{tpu_custom_call.1} parent=1 // pred_check_branch
      %173 = sbr.rel (0) target = $region65
    $region64: #{tpu_custom_call.1} parent=1 // pred_region
      _
    $region65: #{tpu_custom_call.1} parent=1 // pred_fallthru
      _
    // Predicated region
    $region66: #{tpu_custom_call.1} parent=1 // pred_check
      _
    $region67: #{tpu_custom_call.1} parent=1 // pred_check_branch
      %175 = sbr.rel (0) target = $region69
    $region68: #{tpu_custom_call.1} parent=1 // pred_region
      _
    $region69: #{tpu_custom_call.1} parent=1 // pred_fallthru
      _
    // Predicated region
    $region70: #{tpu_custom_call.1} parent=1 // pred_check
      _
    $region71: #{tpu_custom_call.1} parent=1 // pred_check_branch
      %177 = sbr.rel (0) target = $region73
    $region72: #{tpu_custom_call.1} parent=1 // pred_region
      %178 = dma.done [#allocation3], 512
    $region73: #{tpu_custom_call.1} parent=1 // pred_fallthru
      _
    // Predicated region
    $region74: #{tpu_custom_call.1} parent=1 // pred_check
      _
    $region75: #{tpu_custom_call.1} parent=1 // pred_check_branch
      %180 = sbr.rel (0) target = $region77
    $region76: #{tpu_custom_call.1} parent=1 // pred_region
      %181 = dma.done [#allocation6], 16384
    $region77: #{tpu_custom_call.1} parent=1 // pred_fallthru
      _
    // Predicated region
    $region78: #{tpu_custom_call.1} parent=1 // pred_check
      _
    $region79: #{tpu_custom_call.1} parent=1 // pred_check_branch
      %183 = sbr.rel (0) target = $region81
    $region80: #{tpu_custom_call.1} parent=1 // pred_region
      %184 = dma.done [#allocation6], 4096
    $region81: #{tpu_custom_call.1} parent=1 // pred_fallthru
      _
    // Predicated region
    $region82: #{tpu_custom_call.1} parent=1 // pred_check
      _
    $region83: #{tpu_custom_call.1} parent=1 // pred_check_branch
      %186 = sbr.rel (0) target = $region85
    $region84: #{tpu_custom_call.1} parent=1 // pred_region
      %187 = dma.done [#allocation9], 32
    $region85: #{tpu_custom_call.1} parent=1 // pred_fallthru
      _
    // Predicated region
    $region86: #{tpu_custom_call.1} parent=1 // pred_check
      _
    $region87: #{tpu_custom_call.1} parent=1 // pred_check_branch
      %189 = sbr.rel (0) target = $region89
    $region88: #{tpu_custom_call.1} parent=1 // pred_region
      %190 = dma.done [#allocation9], 32
    $region89: #{tpu_custom_call.1} parent=1 // pred_fallthru
      _
    // Predicated region
    $region90: #{tpu_custom_call.1} parent=1 // pred_check
      _
    $region91: #{tpu_custom_call.1} parent=1 // pred_check_branch
      %192 = sbr.rel (0) target = $region93
    $region92: #{tpu_custom_call.1} parent=1 // pred_region
      %193 = dma.done [#allocation12], 32
    $region93: #{tpu_custom_call.1} parent=1 // pred_fallthru
      _
    // Predicated region
    $region94: #{tpu_custom_call.1} parent=1 // pred_check
      _
    $region95: #{tpu_custom_call.1} parent=1 // pred_check_branch
      %195 = sbr.rel (0) target = $region97
    $region96: #{tpu_custom_call.1} parent=1 // pred_region
      %196 = dma.done [#allocation12], 2048
    $region97: #{tpu_custom_call.1} parent=1 // pred_fallthru
      _
    // Predicated region
    $region98: #{tpu_custom_call.1} parent=1 // pred_check
      _
    $region99: #{tpu_custom_call.1} parent=1 // pred_check_branch
      %198 = sbr.rel (0) target = $region101
    $region100: #{tpu_custom_call.1} parent=1 // pred_region
      %199 = dma.done [#allocation15], 16
    $region101: #{tpu_custom_call.1} parent=1 // pred_fallthru
      _
    // Predicated region
    $region102: #{tpu_custom_call.1} parent=1 // pred_check
      _
    $region103: #{tpu_custom_call.1} parent=1 // pred_check_branch
      %201 = sbr.rel (0) target = $region105
    $region104: #{tpu_custom_call.1} parent=1 // pred_region
      %202 = dma.done [#allocation15], 16
    $region105: #{tpu_custom_call.1} parent=1 // pred_fallthru
      _
    // Predicated region
    $region106: #{tpu_custom_call.1} parent=1 // pred_check
      _
    $region107: #{tpu_custom_call.1} parent=1 // pred_check_branch
      %204 = sbr.rel (0) target = $region109
    $region108: #{tpu_custom_call.1} parent=1 // pred_region
      %205 = dma.done [#allocation18], 1024
    $region109: #{tpu_custom_call.1} parent=1 // pred_fallthru
      _
    // Predicated region
    $region110: #{tpu_custom_call.1} parent=1 // pred_check
      _
    $region111: #{tpu_custom_call.1} parent=1 // pred_check_branch
      %207 = sbr.rel (0) target = $region113
    $region112: #{tpu_custom_call.1} parent=1 // pred_region
      %208 = dma.done [#allocation18], 16
    $region113: #{tpu_custom_call.1} parent=1 // pred_fallthru
      _
    // Predicated region
    $region114: #{tpu_custom_call.1} parent=1 // pred_check
      _
    $region115: #{tpu_custom_call.1} parent=1 // pred_check_branch
      %210 = sbr.rel (0) target = $region117
    $region116: #{tpu_custom_call.1} parent=1 // pred_region
      %211 = dma.done [#allocation21], 16
    $region117: #{tpu_custom_call.1} parent=1 // pred_fallthru
      _
    // Predicated region
    $region118: #{tpu_custom_call.1} parent=1 // pred_check
      _
    $region119: #{tpu_custom_call.1} parent=1 // pred_check_branch
      %213 = sbr.rel (0) target = $region121
    $region120: #{tpu_custom_call.1} parent=1 // pred_region
      %214 = dma.done [#allocation21], 16
    $region121: #{tpu_custom_call.1} parent=1 // pred_fallthru
      _
    %v216 = vld [vmem:[#allocation2] sm:$0xff]
    %v217 = vld [vmem:[#allocation2 + $0x8] sm:$0xff]
    %v218 = vld [vmem:[#allocation2 + $0x10] sm:$0xff]
    %v219 = vld [vmem:[#allocation2 + $0x18] sm:$0xff]
    %v220 = vlaneseq
    %v221 = vand.u32 %v220, 127
    %v222 = vadd.s32 %v221, 128
    %v223 = vld [vmem:[%s1] sm:$0xff]
    %224 = vset.pattern.permute.xlu0 0
    %225 = vperm.xlu0 %224, %v223
    %v226 = vpop.permute.xlu0 %225
    %vm227 = vcmp.eq.s32.totalorder %v221, %v226
    %vm228 = vcmp.eq.s32.totalorder %v222, %v226
    %v229 = vsel %vm227, 1.0, 0.0
    %v230 = vsel %vm228, 1.0, 0.0
    %v231 = vpack.c.bf16 %v229, %v229
    %v232 = vpack.c.bf16 %v230, %v230
    %v233 = vld [vmem:[#allocation5] sm:$0xff]
    %v234 = vld [vmem:[#allocation5 + $0x8] sm:$0xff]
    %v235 = vld [vmem:[#allocation5 + $0x10] sm:$0xff]
    %v236 = vld [vmem:[#allocation5 + $0x18] sm:$0xff]
    %v237 = vld [vmem:[#allocation5 + $0x20] sm:$0xff]
    %v238 = vld [vmem:[#allocation5 + $0x28] sm:$0xff]
    %v239 = vld [vmem:[#allocation5 + $0x30] sm:$0xff]
    %v240 = vld [vmem:[#allocation5 + $0x38] sm:$0xff]
    %v241 = vld [vmem:[#allocation5 + $0x40] sm:$0xff]
    %v242 = vld [vmem:[#allocation5 + $0x48] sm:$0xff]
    %v243 = vld [vmem:[#allocation5 + $0x50] sm:$0xff]
    %v244 = vld [vmem:[#allocation5 + $0x58] sm:$0xff]
    %v245 = vld [vmem:[#allocation5 + $0x60] sm:$0xff]
    %v246 = vld [vmem:[#allocation5 + $0x68] sm:$0xff]
    %v247 = vld [vmem:[#allocation5 + $0x70] sm:$0xff]
    %v248 = vld [vmem:[#allocation5 + $0x78] sm:$0xff]
    %v249 = vld [vmem:[#allocation5 + $0x80] sm:$0xff]
    %v250 = vld [vmem:[#allocation5 + $0x88] sm:$0xff]
    %v251 = vld [vmem:[#allocation5 + $0x90] sm:$0xff]
    %v252 = vld [vmem:[#allocation5 + $0x98] sm:$0xff]
    %v253 = vld [vmem:[#allocation5 + $0xa0] sm:$0xff]
    %v254 = vld [vmem:[#allocation5 + $0xa8] sm:$0xff]
    %v255 = vld [vmem:[#allocation5 + $0xb0] sm:$0xff]
    %v256 = vld [vmem:[#allocation5 + $0xb8] sm:$0xff]
    %v257 = vld [vmem:[#allocation5 + $0xc0] sm:$0xff]
    %v258 = vld [vmem:[#allocation5 + $0xc8] sm:$0xff]
    %v259 = vld [vmem:[#allocation5 + $0xd0] sm:$0xff]
    %v260 = vld [vmem:[#allocation5 + $0xd8] sm:$0xff]
    %v261 = vld [vmem:[#allocation5 + $0xe0] sm:$0xff]
    %v262 = vld [vmem:[#allocation5 + $0xe8] sm:$0xff]
    %v263 = vld [vmem:[#allocation5 + $0xf0] sm:$0xff]
    %v264 = vld [vmem:[#allocation5 + $0xf8] sm:$0xff]
    %v265 = vld [vmem:[#allocation5 + $0x100] sm:$0xff]
    %v266 = vld [vmem:[#allocation5 + $0x108] sm:$0xff]
    %v267 = vld [vmem:[#allocation5 + $0x110] sm:$0xff]
    %v268 = vld [vmem:[#allocation5 + $0x118] sm:$0xff]
    %v269 = vld [vmem:[#allocation5 + $0x120] sm:$0xff]
    %v270 = vld [vmem:[#allocation5 + $0x128] sm:$0xff]
    %v271 = vld [vmem:[#allocation5 + $0x130] sm:$0xff]
    %v272 = vld [vmem:[#allocation5 + $0x138] sm:$0xff]
    %v273 = vld [vmem:[#allocation5 + $0x140] sm:$0xff]
    %v274 = vld [vmem:[#allocation5 + $0x148] sm:$0xff]
    %v275 = vld [vmem:[#allocation5 + $0x150] sm:$0xff]
    %v276 = vld [vmem:[#allocation5 + $0x158] sm:$0xff]
    %v277 = vld [vmem:[#allocation5 + $0x160] sm:$0xff]
    %v278 = vld [vmem:[#allocation5 + $0x168] sm:$0xff]
    %v279 = vld [vmem:[#allocation5 + $0x170] sm:$0xff]
    %v280 = vld [vmem:[#allocation5 + $0x178] sm:$0xff]
    %v281 = vld [vmem:[#allocation5 + $0x180] sm:$0xff]
    %v282 = vld [vmem:[#allocation5 + $0x188] sm:$0xff]
    %v283 = vld [vmem:[#allocation5 + $0x190] sm:$0xff]
    %v284 = vld [vmem:[#allocation5 + $0x198] sm:$0xff]
    %v285 = vld [vmem:[#allocation5 + $0x1a0] sm:$0xff]
    %v286 = vld [vmem:[#allocation5 + $0x1a8] sm:$0xff]
    %v287 = vld [vmem:[#allocation5 + $0x1b0] sm:$0xff]
    %v288 = vld [vmem:[#allocation5 + $0x1b8] sm:$0xff]
    %v289 = vld [vmem:[#allocation5 + $0x1c0] sm:$0xff]
    %v290 = vld [vmem:[#allocation5 + $0x1c8] sm:$0xff]
    %v291 = vld [vmem:[#allocation5 + $0x1d0] sm:$0xff]
    %v292 = vld [vmem:[#allocation5 + $0x1d8] sm:$0xff]
    %v293 = vld [vmem:[#allocation5 + $0x1e0] sm:$0xff]
    %v294 = vld [vmem:[#allocation5 + $0x1e8] sm:$0xff]
    %v295 = vld [vmem:[#allocation5 + $0x1f0] sm:$0xff]
    %v296 = vld [vmem:[#allocation5 + $0x1f8] sm:$0xff]
    %v297 = vld [vmem:[#allocation5 + $0x200] sm:$0xff]
    %v298 = vld [vmem:[#allocation5 + $0x208] sm:$0xff]
    %v299 = vld [vmem:[#allocation5 + $0x210] sm:$0xff]
    %v300 = vld [vmem:[#allocation5 + $0x218] sm:$0xff]
    %v301 = vld [vmem:[#allocation5 + $0x220] sm:$0xff]
    %v302 = vld [vmem:[#allocation5 + $0x228] sm:$0xff]
    %v303 = vld [vmem:[#allocation5 + $0x230] sm:$0xff]
    %v304 = vld [vmem:[#allocation5 + $0x238] sm:$0xff]
    %v305 = vld [vmem:[#allocation5 + $0x240] sm:$0xff]
    %v306 = vld [vmem:[#allocation5 + $0x248] sm:$0xff]
    %v307 = vld [vmem:[#allocation5 + $0x250] sm:$0xff]
    %v308 = vld [vmem:[#allocation5 + $0x258] sm:$0xff]
    %v309 = vld [vmem:[#allocation5 + $0x260] sm:$0xff]
    %v310 = vld [vmem:[#allocation5 + $0x268] sm:$0xff]
    %v311 = vld [vmem:[#allocation5 + $0x270] sm:$0xff]
    %v312 = vld [vmem:[#allocation5 + $0x278] sm:$0xff]
    %v313 = vld [vmem:[#allocation5 + $0x280] sm:$0xff]
    %v314 = vld [vmem:[#allocation5 + $0x288] sm:$0xff]
    %v315 = vld [vmem:[#allocation5 + $0x290] sm:$0xff]
    %v316 = vld [vmem:[#allocation5 + $0x298] sm:$0xff]
    %v317 = vld [vmem:[#allocation5 + $0x2a0] sm:$0xff]
    %v318 = vld [vmem:[#allocation5 + $0x2a8] sm:$0xff]
    %v319 = vld [vmem:[#allocation5 + $0x2b0] sm:$0xff]
    %v320 = vld [vmem:[#allocation5 + $0x2b8] sm:$0xff]
    %v321 = vld [vmem:[#allocation5 + $0x2c0] sm:$0xff]
    %v322 = vld [vmem:[#allocation5 + $0x2c8] sm:$0xff]
    %v323 = vld [vmem:[#allocation5 + $0x2d0] sm:$0xff]
    %v324 = vld [vmem:[#allocation5 + $0x2d8] sm:$0xff]
    %v325 = vld [vmem:[#allocation5 + $0x2e0] sm:$0xff]
    %v326 = vld [vmem:[#allocation5 + $0x2e8] sm:$0xff]
    %v327 = vld [vmem:[#allocation5 + $0x2f0] sm:$0xff]
    %v328 = vld [vmem:[#allocation5 + $0x2f8] sm:$0xff]
    %v329 = vld [vmem:[#allocation5 + $0x300] sm:$0xff]
    %v330 = vld [vmem:[#allocation5 + $0x308] sm:$0xff]
    %v331 = vld [vmem:[#allocation5 + $0x310] sm:$0xff]
    %v332 = vld [vmem:[#allocation5 + $0x318] sm:$0xff]
    %v333 = vld [vmem:[#allocation5 + $0x320] sm:$0xff]
    %v334 = vld [vmem:[#allocation5 + $0x328] sm:$0xff]
    %v335 = vld [vmem:[#allocation5 + $0x330] sm:$0xff]
    %v336 = vld [vmem:[#allocation5 + $0x338] sm:$0xff]
    %v337 = vld [vmem:[#allocation5 + $0x340] sm:$0xff]
    %v338 = vld [vmem:[#allocation5 + $0x348] sm:$0xff]
    %v339 = vld [vmem:[#allocation5 + $0x350] sm:$0xff]
    %v340 = vld [vmem:[#allocation5 + $0x358] sm:$0xff]
    %v341 = vld [vmem:[#allocation5 + $0x360] sm:$0xff]
    %v342 = vld [vmem:[#allocation5 + $0x368] sm:$0xff]
    %v343 = vld [vmem:[#allocation5 + $0x370] sm:$0xff]
    %v344 = vld [vmem:[#allocation5 + $0x378] sm:$0xff]
    %v345 = vld [vmem:[#allocation5 + $0x380] sm:$0xff]
    %v346 = vld [vmem:[#allocation5 + $0x388] sm:$0xff]
    %v347 = vld [vmem:[#allocation5 + $0x390] sm:$0xff]
    %v348 = vld [vmem:[#allocation5 + $0x398] sm:$0xff]
    %v349 = vld [vmem:[#allocation5 + $0x3a0] sm:$0xff]
    %v350 = vld [vmem:[#allocation5 + $0x3a8] sm:$0xff]
    %v351 = vld [vmem:[#allocation5 + $0x3b0] sm:$0xff]
    %v352 = vld [vmem:[#allocation5 + $0x3b8] sm:$0xff]
    %v353 = vld [vmem:[#allocation5 + $0x3c0] sm:$0xff]
    %v354 = vld [vmem:[#allocation5 + $0x3c8] sm:$0xff]
    %v355 = vld [vmem:[#allocation5 + $0x3d0] sm:$0xff]
    %v356 = vld [vmem:[#allocation5 + $0x3d8] sm:$0xff]
    %v357 = vld [vmem:[#allocation5 + $0x3e0] sm:$0xff]
    %v358 = vld [vmem:[#allocation5 + $0x3e8] sm:$0xff]
    %v359 = vld [vmem:[#allocation5 + $0x3f0] sm:$0xff]
    %v360 = vld [vmem:[#allocation5 + $0x3f8] sm:$0xff]
    %v361 = vld [vmem:[#allocation7] sm:$0xff]
    %v362 = vld [vmem:[#allocation7 + $0x8] sm:$0xff]
    %v363 = vld [vmem:[#allocation7 + $0x10] sm:$0xff]
    %v364 = vld [vmem:[#allocation7 + $0x18] sm:$0xff]
    %v365 = vld [vmem:[#allocation7 + $0x20] sm:$0xff]
    %v366 = vld [vmem:[#allocation7 + $0x28] sm:$0xff]
    %v367 = vld [vmem:[#allocation7 + $0x30] sm:$0xff]
    %v368 = vld [vmem:[#allocation7 + $0x38] sm:$0xff]
    %v369 = vld [vmem:[#allocation7 + $0x40] sm:$0xff]
    %v370 = vld [vmem:[#allocation7 + $0x48] sm:$0xff]
    %v371 = vld [vmem:[#allocation7 + $0x50] sm:$0xff]
    %v372 = vld [vmem:[#allocation7 + $0x58] sm:$0xff]
    %v373 = vld [vmem:[#allocation7 + $0x60] sm:$0xff]
    %v374 = vld [vmem:[#allocation7 + $0x68] sm:$0xff]
    %v375 = vld [vmem:[#allocation7 + $0x70] sm:$0xff]
    %v376 = vld [vmem:[#allocation7 + $0x78] sm:$0xff]
    %v377 = vld [vmem:[#allocation7 + $0x80] sm:$0xff]
    %v378 = vld [vmem:[#allocation7 + $0x88] sm:$0xff]
    %v379 = vld [vmem:[#allocation7 + $0x90] sm:$0xff]
    %v380 = vld [vmem:[#allocation7 + $0x98] sm:$0xff]
    %v381 = vld [vmem:[#allocation7 + $0xa0] sm:$0xff]
    %v382 = vld [vmem:[#allocation7 + $0xa8] sm:$0xff]
    %v383 = vld [vmem:[#allocation7 + $0xb0] sm:$0xff]
    %v384 = vld [vmem:[#allocation7 + $0xb8] sm:$0xff]
    %v385 = vld [vmem:[#allocation7 + $0xc0] sm:$0xff]
    %v386 = vld [vmem:[#allocation7 + $0xc8] sm:$0xff]
    %v387 = vld [vmem:[#allocation7 + $0xd0] sm:$0xff]
    %v388 = vld [vmem:[#allocation7 + $0xd8] sm:$0xff]
    %v389 = vld [vmem:[#allocation7 + $0xe0] sm:$0xff]
    %v390 = vld [vmem:[#allocation7 + $0xe8] sm:$0xff]
    %v391 = vld [vmem:[#allocation7 + $0xf0] sm:$0xff]
    %v392 = vld [vmem:[#allocation7 + $0xf8] sm:$0xff]
    %v425 = vunpack.c.l.b16 %v361
    %v426 = vunpack.c.h.b16 %v361
    %v427 = vunpack.c.l.b16 %v362
    %v428 = vunpack.c.h.b16 %v362
    %v429 = vunpack.c.l.b16 %v363
    %v430 = vunpack.c.h.b16 %v363
    %v431 = vunpack.c.l.b16 %v364
    %v432 = vunpack.c.h.b16 %v364
    %v433 = vunpack.c.l.b16 %v365
    %v434 = vunpack.c.h.b16 %v365
    %v435 = vunpack.c.l.b16 %v366
    %v436 = vunpack.c.h.b16 %v366
    %v437 = vunpack.c.l.b16 %v367
    %v438 = vunpack.c.h.b16 %v367
    %v439 = vunpack.c.l.b16 %v368
    %v440 = vunpack.c.h.b16 %v368
    %v441 = vunpack.c.l.b16 %v369
    %v442 = vunpack.c.h.b16 %v369
    %v443 = vunpack.c.l.b16 %v370
    %v444 = vunpack.c.h.b16 %v370
    %v445 = vunpack.c.l.b16 %v371
    %v446 = vunpack.c.h.b16 %v371
    %v447 = vunpack.c.l.b16 %v372
    %v448 = vunpack.c.h.b16 %v372
    %v449 = vunpack.c.l.b16 %v373
    %v450 = vunpack.c.h.b16 %v373
    %v451 = vunpack.c.l.b16 %v374
    %v452 = vunpack.c.h.b16 %v374
    %v453 = vunpack.c.l.b16 %v375
    %v454 = vunpack.c.h.b16 %v375
    %v455 = vunpack.c.l.b16 %v376
    %v456 = vunpack.c.h.b16 %v376
    %v457 = vunpack.c.l.b16 %v377
    %v458 = vunpack.c.h.b16 %v377
    %v459 = vunpack.c.l.b16 %v378
    %v460 = vunpack.c.h.b16 %v378
    %v461 = vunpack.c.l.b16 %v379
    %v462 = vunpack.c.h.b16 %v379
    %v463 = vunpack.c.l.b16 %v380
    %v464 = vunpack.c.h.b16 %v380
    %v465 = vunpack.c.l.b16 %v381
    %v466 = vunpack.c.h.b16 %v381
    %v467 = vunpack.c.l.b16 %v382
    %v468 = vunpack.c.h.b16 %v382
    %v469 = vunpack.c.l.b16 %v383
    %v470 = vunpack.c.h.b16 %v383
    %v471 = vunpack.c.l.b16 %v384
    %v472 = vunpack.c.h.b16 %v384
    %v473 = vunpack.c.l.b16 %v385
    %v474 = vunpack.c.h.b16 %v385
    %v475 = vunpack.c.l.b16 %v386
    %v476 = vunpack.c.h.b16 %v386
    %v477 = vunpack.c.l.b16 %v387
    %v478 = vunpack.c.h.b16 %v387
    %v479 = vunpack.c.l.b16 %v388
    %v480 = vunpack.c.h.b16 %v388
    %v481 = vunpack.c.l.b16 %v389
    %v482 = vunpack.c.h.b16 %v389
    %v483 = vunpack.c.l.b16 %v390
    %v484 = vunpack.c.h.b16 %v390
    %v485 = vunpack.c.l.b16 %v391
    %v486 = vunpack.c.h.b16 %v391
    %v487 = vunpack.c.l.b16 %v392
    %v488 = vunpack.c.h.b16 %v392
    %v489 = vpack.c.b16 %v427, %v425
    %v490 = vpack.c.b16 %v428, %v426
    %v491 = vpack.c.b16 %v431, %v429
    %v492 = vpack.c.b16 %v432, %v430
    %v493 = vpack.c.b16 %v435, %v433
    %v494 = vpack.c.b16 %v436, %v434
    %v495 = vpack.c.b16 %v439, %v437
    %v496 = vpack.c.b16 %v440, %v438
    %v497 = vpack.c.b16 %v443, %v441
    %v498 = vpack.c.b16 %v444, %v442
    %v499 = vpack.c.b16 %v447, %v445
    %v500 = vpack.c.b16 %v448, %v446
    %v501 = vpack.c.b16 %v451, %v449
    %v502 = vpack.c.b16 %v452, %v450
    %v503 = vpack.c.b16 %v455, %v453
    %v504 = vpack.c.b16 %v456, %v454
    %v505 = vpack.c.b16 %v459, %v457
    %v506 = vpack.c.b16 %v460, %v458
    %v507 = vpack.c.b16 %v463, %v461
    %v508 = vpack.c.b16 %v464, %v462
    %v509 = vpack.c.b16 %v467, %v465
    %v510 = vpack.c.b16 %v468, %v466
    %v511 = vpack.c.b16 %v471, %v469
    %v512 = vpack.c.b16 %v472, %v470
    %v513 = vpack.c.b16 %v475, %v473
    %v514 = vpack.c.b16 %v476, %v474
    %v515 = vpack.c.b16 %v479, %v477
    %v516 = vpack.c.b16 %v480, %v478
    %v517 = vpack.c.b16 %v483, %v481
    %v518 = vpack.c.b16 %v484, %v482
    %v519 = vpack.c.b16 %v487, %v485
    %v520 = vpack.c.b16 %v488, %v486
    %553 = vmatprep.subr.bf16.mxu0 %v490
    %554 = vmatpush1.bf16.msra.mxu0 %v489
    %555 = vmatprep.subr.bf16.mxu0 %v492
    %556 = vmatpush1.bf16.msra.mxu0 %v491
    %557 = vmatprep.subr.bf16.mxu0 %v494
    %558 = vmatpush1.bf16.msra.mxu0 %v493
    %559 = vmatprep.subr.bf16.mxu0 %v496
    %560 = vmatpush1.bf16.msra.mxu0 %v495
    %561 = vmatprep.subr.bf16.mxu0 %v498
    %562 = vmatpush1.bf16.msra.mxu0 %v497
    %563 = vmatprep.subr.bf16.mxu0 %v500
    %564 = vmatpush1.bf16.msra.mxu0 %v499
    %565 = vmatprep.subr.bf16.mxu0 %v502
    %566 = vmatpush1.bf16.msra.mxu0 %v501
    %567 = vmatprep.subr.bf16.mxu0 %v504
    %568 = vmatpush1.bf16.msra.mxu0 %v503
    %569 = vmatprep.subr.bf16.mxu0 %v506
    %570 = vmatpush1.bf16.msra.mxu0 %v505
    %571 = vmatprep.subr.bf16.mxu0 %v508
    %572 = vmatpush1.bf16.msra.mxu0 %v507
    %573 = vmatprep.subr.bf16.mxu0 %v510
    %574 = vmatpush1.bf16.msra.mxu0 %v509
    %575 = vmatprep.subr.bf16.mxu0 %v512
    %576 = vmatpush1.bf16.msra.mxu0 %v511
    %577 = vmatprep.subr.bf16.mxu0 %v514
    %578 = vmatpush1.bf16.msra.mxu0 %v513
    %579 = vmatprep.subr.bf16.mxu0 %v516
    %580 = vmatpush1.bf16.msra.mxu0 %v515
    %581 = vmatprep.subr.bf16.mxu0 %v518
    %582 = vmatpush1.bf16.msra.mxu0 %v517
    %583 = vmatprep.subr.bf16.mxu0 %v520
    %584 = vmatpush1.bf16.msra.mxu0 %v519
    %585 = vmatprep.mubr.bf16.mxu0 %v232
    %586 = vmatmul.mubr.bf16.gmra.mrb[0].mxu0 %v231
    %v587 = vpop.f32.mrb[0].mxu0
    %v588 = vadd.f32 0.0, %v587
    %v589 = vpop.f32.mrb[0].mxu0
    %v590 = vadd.f32 0.0, %v589
    %v591 = vpop.f32.mrb[0].mxu0
    %v592 = vpop.f32.mrb[0].mxu0
    %593 = vdwg.mxu0
    %v598 = vunpack.c.l.b16 %v216
    %v599 = vunpack.c.h.b16 %v216
    %v600 = vunpack.c.l.b16 %v217
    %v601 = vunpack.c.h.b16 %v217
    %v602 = vunpack.c.l.b16 %v218
    %v603 = vunpack.c.h.b16 %v218
    %v604 = vunpack.c.l.b16 %v219
    %v605 = vunpack.c.h.b16 %v219
    %v606 = vpack.c.b16 %v598, %v598
    %v607 = vpack.c.b16 %v599, %v599
    %v608 = vpack.c.b16 %v600, %v600
    %v609 = vpack.c.b16 %v601, %v601
    %v610 = vpack.c.b16 %v602, %v602
    %v611 = vpack.c.b16 %v603, %v603
    %v612 = vpack.c.b16 %v604, %v604
    %v613 = vpack.c.b16 %v605, %v605
    %v750 = vunpack.c.l.b16 %v233
    %v751 = vunpack.c.h.b16 %v233
    %v752 = vunpack.c.l.b16 %v234
    %v753 = vunpack.c.h.b16 %v234
    %v754 = vunpack.c.l.b16 %v235
    %v755 = vunpack.c.h.b16 %v235
    %v756 = vunpack.c.l.b16 %v236
    %v757 = vunpack.c.h.b16 %v236
    %v758 = vunpack.c.l.b16 %v237
    %v759 = vunpack.c.h.b16 %v237
    %v760 = vunpack.c.l.b16 %v238
    %v761 = vunpack.c.h.b16 %v238
    %v762 = vunpack.c.l.b16 %v239
    %v763 = vunpack.c.h.b16 %v239
    %v764 = vunpack.c.l.b16 %v240
    %v765 = vunpack.c.h.b16 %v240
    %v766 = vunpack.c.l.b16 %v241
    %v767 = vunpack.c.h.b16 %v241
    %v768 = vunpack.c.l.b16 %v242
    %v769 = vunpack.c.h.b16 %v242
    %v770 = vunpack.c.l.b16 %v243
    %v771 = vunpack.c.h.b16 %v243
    %v772 = vunpack.c.l.b16 %v244
    %v773 = vunpack.c.h.b16 %v244
    %v774 = vunpack.c.l.b16 %v245
    %v775 = vunpack.c.h.b16 %v245
    %v776 = vunpack.c.l.b16 %v246
    %v777 = vunpack.c.h.b16 %v246
    %v778 = vunpack.c.l.b16 %v247
    %v779 = vunpack.c.h.b16 %v247
    %v780 = vunpack.c.l.b16 %v248
    %v781 = vunpack.c.h.b16 %v248
    %v782 = vunpack.c.l.b16 %v249
    %v783 = vunpack.c.h.b16 %v249
    %v784 = vunpack.c.l.b16 %v250
    %v785 = vunpack.c.h.b16 %v250
    %v786 = vunpack.c.l.b16 %v251
    %v787 = vunpack.c.h.b16 %v251
    %v788 = vunpack.c.l.b16 %v252
    %v789 = vunpack.c.h.b16 %v252
    %v790 = vunpack.c.l.b16 %v253
    %v791 = vunpack.c.h.b16 %v253
    %v792 = vunpack.c.l.b16 %v254
    %v793 = vunpack.c.h.b16 %v254
    %v794 = vunpack.c.l.b16 %v255
    %v795 = vunpack.c.h.b16 %v255
    %v796 = vunpack.c.l.b16 %v256
    %v797 = vunpack.c.h.b16 %v256
    %v798 = vunpack.c.l.b16 %v257
    %v799 = vunpack.c.h.b16 %v257
    %v800 = vunpack.c.l.b16 %v258
    %v801 = vunpack.c.h.b16 %v258
    %v802 = vunpack.c.l.b16 %v259
    %v803 = vunpack.c.h.b16 %v259
    %v804 = vunpack.c.l.b16 %v260
    %v805 = vunpack.c.h.b16 %v260
    %v806 = vunpack.c.l.b16 %v261
    %v807 = vunpack.c.h.b16 %v261
    %v808 = vunpack.c.l.b16 %v262
    %v809 = vunpack.c.h.b16 %v262
    %v810 = vunpack.c.l.b16 %v263
    %v811 = vunpack.c.h.b16 %v263
    %v812 = vunpack.c.l.b16 %v264
    %v813 = vunpack.c.h.b16 %v264
    %v814 = vunpack.c.l.b16 %v265
    %v815 = vunpack.c.h.b16 %v265
    %v816 = vunpack.c.l.b16 %v266
    %v817 = vunpack.c.h.b16 %v266
    %v818 = vunpack.c.l.b16 %v267
    %v819 = vunpack.c.h.b16 %v267
    %v820 = vunpack.c.l.b16 %v268
    %v821 = vunpack.c.h.b16 %v268
    %v822 = vunpack.c.l.b16 %v269
    %v823 = vunpack.c.h.b16 %v269
    %v824 = vunpack.c.l.b16 %v270
    %v825 = vunpack.c.h.b16 %v270
    %v826 = vunpack.c.l.b16 %v271
    %v827 = vunpack.c.h.b16 %v271
    %v828 = vunpack.c.l.b16 %v272
    %v829 = vunpack.c.h.b16 %v272
    %v830 = vunpack.c.l.b16 %v273
    %v831 = vunpack.c.h.b16 %v273
    %v832 = vunpack.c.l.b16 %v274
    %v833 = vunpack.c.h.b16 %v274
    %v834 = vunpack.c.l.b16 %v275
    %v835 = vunpack.c.h.b16 %v275
    %v836 = vunpack.c.l.b16 %v276
    %v837 = vunpack.c.h.b16 %v276
    %v838 = vunpack.c.l.b16 %v277
    %v839 = vunpack.c.h.b16 %v277
    %v840 = vunpack.c.l.b16 %v278
    %v841 = vunpack.c.h.b16 %v278
    %v842 = vunpack.c.l.b16 %v279
    %v843 = vunpack.c.h.b16 %v279
    %v844 = vunpack.c.l.b16 %v280
    %v845 = vunpack.c.h.b16 %v280
    %v846 = vunpack.c.l.b16 %v281
    %v847 = vunpack.c.h.b16 %v281
    %v848 = vunpack.c.l.b16 %v282
    %v849 = vunpack.c.h.b16 %v282
    %v850 = vunpack.c.l.b16 %v283
    %v851 = vunpack.c.h.b16 %v283
    %v852 = vunpack.c.l.b16 %v284
    %v853 = vunpack.c.h.b16 %v284
    %v854 = vunpack.c.l.b16 %v285
    %v855 = vunpack.c.h.b16 %v285
    %v856 = vunpack.c.l.b16 %v286
    %v857 = vunpack.c.h.b16 %v286
    %v858 = vunpack.c.l.b16 %v287
    %v859 = vunpack.c.h.b16 %v287
    %v860 = vunpack.c.l.b16 %v288
    %v861 = vunpack.c.h.b16 %v288
    %v862 = vunpack.c.l.b16 %v289
    %v863 = vunpack.c.h.b16 %v289
    %v864 = vunpack.c.l.b16 %v290
    %v865 = vunpack.c.h.b16 %v290
    %v866 = vunpack.c.l.b16 %v291
    %v867 = vunpack.c.h.b16 %v291
    %v868 = vunpack.c.l.b16 %v292
    %v869 = vunpack.c.h.b16 %v292
    %v870 = vunpack.c.l.b16 %v293
    %v871 = vunpack.c.h.b16 %v293
    %v872 = vunpack.c.l.b16 %v294
    %v873 = vunpack.c.h.b16 %v294
    %v874 = vunpack.c.l.b16 %v295
    %v875 = vunpack.c.h.b16 %v295
    %v876 = vunpack.c.l.b16 %v296
    %v877 = vunpack.c.h.b16 %v296
    %v878 = vunpack.c.l.b16 %v297
    %v879 = vunpack.c.h.b16 %v297
    %v880 = vunpack.c.l.b16 %v298
    %v881 = vunpack.c.h.b16 %v298
    %v882 = vunpack.c.l.b16 %v299
    %v883 = vunpack.c.h.b16 %v299
    %v884 = vunpack.c.l.b16 %v300
    %v885 = vunpack.c.h.b16 %v300
    %v886 = vunpack.c.l.b16 %v301
    %v887 = vunpack.c.h.b16 %v301
    %v888 = vunpack.c.l.b16 %v302
    %v889 = vunpack.c.h.b16 %v302
    %v890 = vunpack.c.l.b16 %v303
    %v891 = vunpack.c.h.b16 %v303
    %v892 = vunpack.c.l.b16 %v304
    %v893 = vunpack.c.h.b16 %v304
    %v894 = vunpack.c.l.b16 %v305
    %v895 = vunpack.c.h.b16 %v305
    %v896 = vunpack.c.l.b16 %v306
    %v897 = vunpack.c.h.b16 %v306
    %v898 = vunpack.c.l.b16 %v307
    %v899 = vunpack.c.h.b16 %v307
    %v900 = vunpack.c.l.b16 %v308
    %v901 = vunpack.c.h.b16 %v308
    %v902 = vunpack.c.l.b16 %v309
    %v903 = vunpack.c.h.b16 %v309
    %v904 = vunpack.c.l.b16 %v310
    %v905 = vunpack.c.h.b16 %v310
    %v906 = vunpack.c.l.b16 %v311
    %v907 = vunpack.c.h.b16 %v311
    %v908 = vunpack.c.l.b16 %v312
    %v909 = vunpack.c.h.b16 %v312
    %v910 = vunpack.c.l.b16 %v313
    %v911 = vunpack.c.h.b16 %v313
    %v912 = vunpack.c.l.b16 %v314
    %v913 = vunpack.c.h.b16 %v314
    %v914 = vunpack.c.l.b16 %v315
    %v915 = vunpack.c.h.b16 %v315
    %v916 = vunpack.c.l.b16 %v316
    %v917 = vunpack.c.h.b16 %v316
    %v918 = vunpack.c.l.b16 %v317
    %v919 = vunpack.c.h.b16 %v317
    %v920 = vunpack.c.l.b16 %v318
    %v921 = vunpack.c.h.b16 %v318
    %v922 = vunpack.c.l.b16 %v319
    %v923 = vunpack.c.h.b16 %v319
    %v924 = vunpack.c.l.b16 %v320
    %v925 = vunpack.c.h.b16 %v320
    %v926 = vunpack.c.l.b16 %v321
    %v927 = vunpack.c.h.b16 %v321
    %v928 = vunpack.c.l.b16 %v322
    %v929 = vunpack.c.h.b16 %v322
    %v930 = vunpack.c.l.b16 %v323
    %v931 = vunpack.c.h.b16 %v323
    %v932 = vunpack.c.l.b16 %v324
    %v933 = vunpack.c.h.b16 %v324
    %v934 = vunpack.c.l.b16 %v325
    %v935 = vunpack.c.h.b16 %v325
    %v936 = vunpack.c.l.b16 %v326
    %v937 = vunpack.c.h.b16 %v326
    %v938 = vunpack.c.l.b16 %v327
    %v939 = vunpack.c.h.b16 %v327
    %v940 = vunpack.c.l.b16 %v328
    %v941 = vunpack.c.h.b16 %v328
    %v942 = vunpack.c.l.b16 %v329
    %v943 = vunpack.c.h.b16 %v329
    %v944 = vunpack.c.l.b16 %v330
    %v945 = vunpack.c.h.b16 %v330
    %v946 = vunpack.c.l.b16 %v331
    %v947 = vunpack.c.h.b16 %v331
    %v948 = vunpack.c.l.b16 %v332
    %v949 = vunpack.c.h.b16 %v332
    %v950 = vunpack.c.l.b16 %v333
    %v951 = vunpack.c.h.b16 %v333
    %v952 = vunpack.c.l.b16 %v334
    %v953 = vunpack.c.h.b16 %v334
    %v954 = vunpack.c.l.b16 %v335
    %v955 = vunpack.c.h.b16 %v335
    %v956 = vunpack.c.l.b16 %v336
    %v957 = vunpack.c.h.b16 %v336
    %v958 = vunpack.c.l.b16 %v337
    %v959 = vunpack.c.h.b16 %v337
    %v960 = vunpack.c.l.b16 %v338
    %v961 = vunpack.c.h.b16 %v338
    %v962 = vunpack.c.l.b16 %v339
    %v963 = vunpack.c.h.b16 %v339
    %v964 = vunpack.c.l.b16 %v340
    %v965 = vunpack.c.h.b16 %v340
    %v966 = vunpack.c.l.b16 %v341
    %v967 = vunpack.c.h.b16 %v341
    %v968 = vunpack.c.l.b16 %v342
    %v969 = vunpack.c.h.b16 %v342
    %v970 = vunpack.c.l.b16 %v343
    %v971 = vunpack.c.h.b16 %v343
    %v972 = vunpack.c.l.b16 %v344
    %v973 = vunpack.c.h.b16 %v344
    %v974 = vunpack.c.l.b16 %v345
    %v975 = vunpack.c.h.b16 %v345
    %v976 = vunpack.c.l.b16 %v346
    %v977 = vunpack.c.h.b16 %v346
    %v978 = vunpack.c.l.b16 %v347
    %v979 = vunpack.c.h.b16 %v347
    %v980 = vunpack.c.l.b16 %v348
    %v981 = vunpack.c.h.b16 %v348
    %v982 = vunpack.c.l.b16 %v349
    %v983 = vunpack.c.h.b16 %v349
    %v984 = vunpack.c.l.b16 %v350
    %v985 = vunpack.c.h.b16 %v350
    %v986 = vunpack.c.l.b16 %v351
    %v987 = vunpack.c.h.b16 %v351
    %v988 = vunpack.c.l.b16 %v352
    %v989 = vunpack.c.h.b16 %v352
    %v990 = vunpack.c.l.b16 %v353
    %v991 = vunpack.c.h.b16 %v353
    %v992 = vunpack.c.l.b16 %v354
    %v993 = vunpack.c.h.b16 %v354
    %v994 = vunpack.c.l.b16 %v355
    %v995 = vunpack.c.h.b16 %v355
    %v996 = vunpack.c.l.b16 %v356
    %v997 = vunpack.c.h.b16 %v356
    %v998 = vunpack.c.l.b16 %v357
    %v999 = vunpack.c.h.b16 %v357
    %v1000 = vunpack.c.l.b16 %v358
    %v1001 = vunpack.c.h.b16 %v358
    %v1002 = vunpack.c.l.b16 %v359
    %v1003 = vunpack.c.h.b16 %v359
    %v1004 = vunpack.c.l.b16 %v360
    %v1005 = vunpack.c.h.b16 %v360
    %v1006 = vpack.c.b16 %v752, %v750
    %v1007 = vpack.c.b16 %v753, %v751
    %v1008 = vpack.c.b16 %v756, %v754
    %v1009 = vpack.c.b16 %v757, %v755
    %v1010 = vpack.c.b16 %v760, %v758
    %v1011 = vpack.c.b16 %v761, %v759
    %v1012 = vpack.c.b16 %v764, %v762
    %v1013 = vpack.c.b16 %v765, %v763
    %v1014 = vpack.c.b16 %v768, %v766
    %v1015 = vpack.c.b16 %v769, %v767
    %v1016 = vpack.c.b16 %v772, %v770
    %v1017 = vpack.c.b16 %v773, %v771
    %v1018 = vpack.c.b16 %v776, %v774
    %v1019 = vpack.c.b16 %v777, %v775
    %v1020 = vpack.c.b16 %v780, %v778
    %v1021 = vpack.c.b16 %v781, %v779
    %v1022 = vpack.c.b16 %v784, %v782
    %v1023 = vpack.c.b16 %v785, %v783
    %v1024 = vpack.c.b16 %v788, %v786
    %v1025 = vpack.c.b16 %v789, %v787
    %v1026 = vpack.c.b16 %v792, %v790
    %v1027 = vpack.c.b16 %v793, %v791
    %v1028 = vpack.c.b16 %v796, %v794
    %v1029 = vpack.c.b16 %v797, %v795
    %v1030 = vpack.c.b16 %v800, %v798
    %v1031 = vpack.c.b16 %v801, %v799
    %v1032 = vpack.c.b16 %v804, %v802
    %v1033 = vpack.c.b16 %v805, %v803
    %v1034 = vpack.c.b16 %v808, %v806
    %v1035 = vpack.c.b16 %v809, %v807
    %v1036 = vpack.c.b16 %v812, %v810
    %v1037 = vpack.c.b16 %v813, %v811
    %v1038 = vpack.c.b16 %v816, %v814
    %v1039 = vpack.c.b16 %v817, %v815
    %v1040 = vpack.c.b16 %v820, %v818
    %v1041 = vpack.c.b16 %v821, %v819
    %v1042 = vpack.c.b16 %v824, %v822
    %v1043 = vpack.c.b16 %v825, %v823
    %v1044 = vpack.c.b16 %v828, %v826
    %v1045 = vpack.c.b16 %v829, %v827
    %v1046 = vpack.c.b16 %v832, %v830
    %v1047 = vpack.c.b16 %v833, %v831
    %v1048 = vpack.c.b16 %v836, %v834
    %v1049 = vpack.c.b16 %v837, %v835
    %v1050 = vpack.c.b16 %v840, %v838
    %v1051 = vpack.c.b16 %v841, %v839
    %v1052 = vpack.c.b16 %v844, %v842
    %v1053 = vpack.c.b16 %v845, %v843
    %v1054 = vpack.c.b16 %v848, %v846
    %v1055 = vpack.c.b16 %v849, %v847
    %v1056 = vpack.c.b16 %v852, %v850
    %v1057 = vpack.c.b16 %v853, %v851
    %v1058 = vpack.c.b16 %v856, %v854
    %v1059 = vpack.c.b16 %v857, %v855
    %v1060 = vpack.c.b16 %v860, %v858
    %v1061 = vpack.c.b16 %v861, %v859
    %v1062 = vpack.c.b16 %v864, %v862
    %v1063 = vpack.c.b16 %v865, %v863
    %v1064 = vpack.c.b16 %v868, %v866
    %v1065 = vpack.c.b16 %v869, %v867
    %v1066 = vpack.c.b16 %v872, %v870
    %v1067 = vpack.c.b16 %v873, %v871
    %v1068 = vpack.c.b16 %v876, %v874
    %v1069 = vpack.c.b16 %v877, %v875
    %v1070 = vpack.c.b16 %v880, %v878
    %v1071 = vpack.c.b16 %v881, %v879
    %v1072 = vpack.c.b16 %v884, %v882
    %v1073 = vpack.c.b16 %v885, %v883
    %v1074 = vpack.c.b16 %v888, %v886
    %v1075 = vpack.c.b16 %v889, %v887
    %v1076 = vpack.c.b16 %v892, %v890
    %v1077 = vpack.c.b16 %v893, %v891
    %v1078 = vpack.c.b16 %v896, %v894
    %v1079 = vpack.c.b16 %v897, %v895
    %v1080 = vpack.c.b16 %v900, %v898
    %v1081 = vpack.c.b16 %v901, %v899
    %v1082 = vpack.c.b16 %v904, %v902
    %v1083 = vpack.c.b16 %v905, %v903
    %v1084 = vpack.c.b16 %v908, %v906
    %v1085 = vpack.c.b16 %v909, %v907
    %v1086 = vpack.c.b16 %v912, %v910
    %v1087 = vpack.c.b16 %v913, %v911
    %v1088 = vpack.c.b16 %v916, %v914
    %v1089 = vpack.c.b16 %v917, %v915
    %v1090 = vpack.c.b16 %v920, %v918
    %v1091 = vpack.c.b16 %v921, %v919
    %v1092 = vpack.c.b16 %v924, %v922
    %v1093 = vpack.c.b16 %v925, %v923
    %v1094 = vpack.c.b16 %v928, %v926
    %v1095 = vpack.c.b16 %v929, %v927
    %v1096 = vpack.c.b16 %v932, %v930
    %v1097 = vpack.c.b16 %v933, %v931
    %v1098 = vpack.c.b16 %v936, %v934
    %v1099 = vpack.c.b16 %v937, %v935
    %v1100 = vpack.c.b16 %v940, %v938
    %v1101 = vpack.c.b16 %v941, %v939
    %v1102 = vpack.c.b16 %v944, %v942
    %v1103 = vpack.c.b16 %v945, %v943
    %v1104 = vpack.c.b16 %v948, %v946
    %v1105 = vpack.c.b16 %v949, %v947
    %v1106 = vpack.c.b16 %v952, %v950
    %v1107 = vpack.c.b16 %v953, %v951
    %v1108 = vpack.c.b16 %v956, %v954
    %v1109 = vpack.c.b16 %v957, %v955
    %v1110 = vpack.c.b16 %v960, %v958
    %v1111 = vpack.c.b16 %v961, %v959
    %v1112 = vpack.c.b16 %v964, %v962
    %v1113 = vpack.c.b16 %v965, %v963
    %v1114 = vpack.c.b16 %v968, %v966
    %v1115 = vpack.c.b16 %v969, %v967
    %v1116 = vpack.c.b16 %v972, %v970
    %v1117 = vpack.c.b16 %v973, %v971
    %v1118 = vpack.c.b16 %v976, %v974
    %v1119 = vpack.c.b16 %v977, %v975
    %v1120 = vpack.c.b16 %v980, %v978
    %v1121 = vpack.c.b16 %v981, %v979
    %v1122 = vpack.c.b16 %v984, %v982
    %v1123 = vpack.c.b16 %v985, %v983
    %v1124 = vpack.c.b16 %v988, %v986
    %v1125 = vpack.c.b16 %v989, %v987
    %v1126 = vpack.c.b16 %v992, %v990
    %v1127 = vpack.c.b16 %v993, %v991
    %v1128 = vpack.c.b16 %v996, %v994
    %v1129 = vpack.c.b16 %v997, %v995
    %v1130 = vpack.c.b16 %v1000, %v998
    %v1131 = vpack.c.b16 %v1001, %v999
    %v1132 = vpack.c.b16 %v1004, %v1002
    %v1133 = vpack.c.b16 %v1005, %v1003
    %1262 = vmatprep.subr.bf16.mxu0 %v1007
    %1263 = vmatpush1.bf16.msra.mxu0 %v1006
    %1264 = vmatprep.subr.bf16.mxu0 %v1009
    %1265 = vmatpush1.bf16.msra.mxu0 %v1008
    %1266 = vmatprep.subr.bf16.mxu0 %v1011
    %1267 = vmatpush1.bf16.msra.mxu0 %v1010
    %1268 = vmatprep.subr.bf16.mxu0 %v1013
    %1269 = vmatpush1.bf16.msra.mxu0 %v1012
    %1270 = vmatprep.subr.bf16.mxu0 %v1015
    %1271 = vmatpush1.bf16.msra.mxu0 %v1014
    %1272 = vmatprep.subr.bf16.mxu0 %v1017
    %1273 = vmatpush1.bf16.msra.mxu0 %v1016
    %1274 = vmatprep.subr.bf16.mxu0 %v1019
    %1275 = vmatpush1.bf16.msra.mxu0 %v1018
    %1276 = vmatprep.subr.bf16.mxu0 %v1021
    %1277 = vmatpush1.bf16.msra.mxu0 %v1020
    %1278 = vmatprep.subr.bf16.mxu0 %v1023
    %1279 = vmatpush1.bf16.msra.mxu0 %v1022
    %1280 = vmatprep.subr.bf16.mxu0 %v1025
    %1281 = vmatpush1.bf16.msra.mxu0 %v1024
    %1282 = vmatprep.subr.bf16.mxu0 %v1027
    %1283 = vmatpush1.bf16.msra.mxu0 %v1026
    %1284 = vmatprep.subr.bf16.mxu0 %v1029
    %1285 = vmatpush1.bf16.msra.mxu0 %v1028
    %1286 = vmatprep.subr.bf16.mxu0 %v1031
    %1287 = vmatpush1.bf16.msra.mxu0 %v1030
    %1288 = vmatprep.subr.bf16.mxu0 %v1033
    %1289 = vmatpush1.bf16.msra.mxu0 %v1032
    %1290 = vmatprep.subr.bf16.mxu0 %v1035
    %1291 = vmatpush1.bf16.msra.mxu0 %v1034
    %1292 = vmatprep.subr.bf16.mxu0 %v1037
    %1293 = vmatpush1.bf16.msra.mxu0 %v1036
    %1294 = vmatprep.mubr.bf16.mxu0 %v607
    %1295 = vmatmul.mubr.bf16.gmra.mrb[0].mxu0 %v606
    %v1296 = vpop.f32.mrb[0].mxu0
    %v1297 = vadd.f32 %v588, %v1296
    %v1298 = vpop.f32.mrb[0].mxu0
    %v1299 = vadd.f32 %v590, %v1298
    %v1300 = vpop.f32.mrb[0].mxu0
    %v1301 = vpop.f32.mrb[0].mxu0
    %1302 = vdwg.mxu0
    %1303 = vmatprep.subr.bf16.mxu0 %v1039
    %1304 = vmatpush1.bf16.msra.mxu0 %v1038
    %1305 = vmatprep.subr.bf16.mxu0 %v1041
    %1306 = vmatpush1.bf16.msra.mxu0 %v1040
    %1307 = vmatprep.subr.bf16.mxu0 %v1043
    %1308 = vmatpush1.bf16.msra.mxu0 %v1042
    %1309 = vmatprep.subr.bf16.mxu0 %v1045
    %1310 = vmatpush1.bf16.msra.mxu0 %v1044
    %1311 = vmatprep.subr.bf16.mxu0 %v1047
    %1312 = vmatpush1.bf16.msra.mxu0 %v1046
    %1313 = vmatprep.subr.bf16.mxu0 %v1049
    %1314 = vmatpush1.bf16.msra.mxu0 %v1048
    %1315 = vmatprep.subr.bf16.mxu0 %v1051
    %1316 = vmatpush1.bf16.msra.mxu0 %v1050
    %1317 = vmatprep.subr.bf16.mxu0 %v1053
    %1318 = vmatpush1.bf16.msra.mxu0 %v1052
    %1319 = vmatprep.subr.bf16.mxu0 %v1055
    %1320 = vmatpush1.bf16.msra.mxu0 %v1054
    %1321 = vmatprep.subr.bf16.mxu0 %v1057
    %1322 = vmatpush1.bf16.msra.mxu0 %v1056
    %1323 = vmatprep.subr.bf16.mxu0 %v1059
    %1324 = vmatpush1.bf16.msra.mxu0 %v1058
    %1325 = vmatprep.subr.bf16.mxu0 %v1061
    %1326 = vmatpush1.bf16.msra.mxu0 %v1060
    %1327 = vmatprep.subr.bf16.mxu0 %v1063
    %1328 = vmatpush1.bf16.msra.mxu0 %v1062
    %1329 = vmatprep.subr.bf16.mxu0 %v1065
    %1330 = vmatpush1.bf16.msra.mxu0 %v1064
    %1331 = vmatprep.subr.bf16.mxu0 %v1067
    %1332 = vmatpush1.bf16.msra.mxu0 %v1066
    %1333 = vmatprep.subr.bf16.mxu0 %v1069
    %1334 = vmatpush1.bf16.msra.mxu0 %v1068
    %1335 = vmatprep.mubr.bf16.mxu0 %v609
    %1336 = vmatmul.mubr.bf16.gmra.mrb[0].mxu0 %v608
    %v1337 = vpop.f32.mrb[0].mxu0
    %v1338 = vadd.f32 %v1297, %v1337
    %v1339 = vpop.f32.mrb[0].mxu0
    %v1340 = vadd.f32 %v1299, %v1339
    %v1341 = vpop.f32.mrb[0].mxu0
    %v1342 = vpop.f32.mrb[0].mxu0
    %1343 = vdwg.mxu0
    %1344 = vmatprep.subr.bf16.mxu0 %v1071
    %1345 = vmatpush1.bf16.msra.mxu0 %v1070
    %1346 = vmatprep.subr.bf16.mxu0 %v1073
    %1347 = vmatpush1.bf16.msra.mxu0 %v1072
    %1348 = vmatprep.subr.bf16.mxu0 %v1075
    %1349 = vmatpush1.bf16.msra.mxu0 %v1074
    %1350 = vmatprep.subr.bf16.mxu0 %v1077
    %1351 = vmatpush1.bf16.msra.mxu0 %v1076
    %1352 = vmatprep.subr.bf16.mxu0 %v1079
    %1353 = vmatpush1.bf16.msra.mxu0 %v1078
    %1354 = vmatprep.subr.bf16.mxu0 %v1081
    %1355 = vmatpush1.bf16.msra.mxu0 %v1080
    %1356 = vmatprep.subr.bf16.mxu0 %v1083
    %1357 = vmatpush1.bf16.msra.mxu0 %v1082
    %1358 = vmatprep.subr.bf16.mxu0 %v1085
    %1359 = vmatpush1.bf16.msra.mxu0 %v1084
    %1360 = vmatprep.subr.bf16.mxu0 %v1087
    %1361 = vmatpush1.bf16.msra.mxu0 %v1086
    %1362 = vmatprep.subr.bf16.mxu0 %v1089
    %1363 = vmatpush1.bf16.msra.mxu0 %v1088
    %1364 = vmatprep.subr.bf16.mxu0 %v1091
    %1365 = vmatpush1.bf16.msra.mxu0 %v1090
    %1366 = vmatprep.subr.bf16.mxu0 %v1093
    %1367 = vmatpush1.bf16.msra.mxu0 %v1092
    %1368 = vmatprep.subr.bf16.mxu0 %v1095
    %1369 = vmatpush1.bf16.msra.mxu0 %v1094
    %1370 = vmatprep.subr.bf16.mxu0 %v1097
    %1371 = vmatpush1.bf16.msra.mxu0 %v1096
    %1372 = vmatprep.subr.bf16.mxu0 %v1099
    %1373 = vmatpush1.bf16.msra.mxu0 %v1098
    %1374 = vmatprep.subr.bf16.mxu0 %v1101
    %1375 = vmatpush1.bf16.msra.mxu0 %v1100
    %1376 = vmatprep.mubr.bf16.mxu0 %v611
    %1377 = vmatmul.mubr.bf16.gmra.mrb[0].mxu0 %v610
    %v1378 = vpop.f32.mrb[0].mxu0
    %v1379 = vadd.f32 %v1338, %v1378
    %v1380 = vpop.f32.mrb[0].mxu0
    %v1381 = vadd.f32 %v1340, %v1380
    %v1382 = vpop.f32.mrb[0].mxu0
    %v1383 = vpop.f32.mrb[0].mxu0
    %1384 = vdwg.mxu0
    %1385 = vmatprep.subr.bf16.mxu0 %v1103
    %1386 = vmatpush1.bf16.msra.mxu0 %v1102
    %1387 = vmatprep.subr.bf16.mxu0 %v1105
    %1388 = vmatpush1.bf16.msra.mxu0 %v1104
    %1389 = vmatprep.subr.bf16.mxu0 %v1107
    %1390 = vmatpush1.bf16.msra.mxu0 %v1106
    %1391 = vmatprep.subr.bf16.mxu0 %v1109
    %1392 = vmatpush1.bf16.msra.mxu0 %v1108
    %1393 = vmatprep.subr.bf16.mxu0 %v1111
    %1394 = vmatpush1.bf16.msra.mxu0 %v1110
    %1395 = vmatprep.subr.bf16.mxu0 %v1113
    %1396 = vmatpush1.bf16.msra.mxu0 %v1112
    %1397 = vmatprep.subr.bf16.mxu0 %v1115
    %1398 = vmatpush1.bf16.msra.mxu0 %v1114
    %1399 = vmatprep.subr.bf16.mxu0 %v1117
    %1400 = vmatpush1.bf16.msra.mxu0 %v1116
    %1401 = vmatprep.subr.bf16.mxu0 %v1119
    %1402 = vmatpush1.bf16.msra.mxu0 %v1118
    %1403 = vmatprep.subr.bf16.mxu0 %v1121
    %1404 = vmatpush1.bf16.msra.mxu0 %v1120
    %1405 = vmatprep.subr.bf16.mxu0 %v1123
    %1406 = vmatpush1.bf16.msra.mxu0 %v1122
    %1407 = vmatprep.subr.bf16.mxu0 %v1125
    %1408 = vmatpush1.bf16.msra.mxu0 %v1124
    %1409 = vmatprep.subr.bf16.mxu0 %v1127
    %1410 = vmatpush1.bf16.msra.mxu0 %v1126
    %1411 = vmatprep.subr.bf16.mxu0 %v1129
    %1412 = vmatpush1.bf16.msra.mxu0 %v1128
    %1413 = vmatprep.subr.bf16.mxu0 %v1131
    %1414 = vmatpush1.bf16.msra.mxu0 %v1130
    %1415 = vmatprep.subr.bf16.mxu0 %v1133
    %1416 = vmatpush1.bf16.msra.mxu0 %v1132
    %1417 = vmatprep.mubr.bf16.mxu0 %v613
    %1418 = vmatmul.mubr.bf16.gmra.mrb[0].mxu0 %v612
    %v1419 = vpop.f32.mrb[0].mxu0
    %v1420 = vadd.f32 %v1379, %v1419
    %v1421 = vpop.f32.mrb[0].mxu0
    %v1422 = vadd.f32 %v1381, %v1421
    %v1423 = vpop.f32.mrb[0].mxu0
    %v1424 = vpop.f32.mrb[0].mxu0
    %1425 = vdwg.mxu0
    %v1426 = vld [vmem:[#allocation8] sm:$0x3]
    %v1428 = vlaneseq
    %v1429 = vshrl.u32 %v1428, 7
    %v1430 = vsub.s32 0, %v1429
    %v1431 = vrot.slane %v1426, %v1430
    %v1432 = vlaneseq
    %v1433 = vshrl.u32 %v1432, 7
    %v1434 = vsub.s32 1, %v1433
    %v1435 = vrot.slane %v1426, %v1434
    %v1438 = vadd.f32 %v1420, %v1431
    %v1439 = vadd.f32 %v1422, %v1435
    %v1440 = vmax.f32 %v1438, 0.0
    %v1441 = vmax.f32 %v1439, 0.0
    %v1442 = vrot.slane %v1440, 4
    %v1443 = vadd.f32 %v1440, %v1442
    %v1444 = vrot.slane %v1443, 2
    %v1445 = vadd.f32 %v1443, %v1444
    %v1446 = vrot.slane %v1445, 1
    %v1447 = vadd.f32 %v1445, %v1446
    %v1448 = vrot.slane %v1441, 4
    %v1449 = vadd.f32 %v1441, %v1448
    %v1450 = vrot.slane %v1449, 2
    %v1451 = vadd.f32 %v1449, %v1450
    %v1452 = vrot.slane %v1451, 1
    %v1453 = vadd.f32 %v1451, %v1452
    %v1454 = vmul.f32 %v1447, 0.125
    %v1455 = vmul.f32 %v1453, 0.125
    %v1456 = vsub.f32 %v1440, %v1454
    %v1457 = vsub.f32 %v1441, %v1455
    %v1458 = vmul.f32 %v1456, %v1456
    %v1459 = vmul.f32 %v1457, %v1457
    %v1460 = vrot.slane %v1458, 4
    %v1461 = vadd.f32 %v1458, %v1460
    %v1462 = vrot.slane %v1461, 2
    %v1463 = vadd.f32 %v1461, %v1462
    %v1464 = vrot.slane %v1463, 1
    %v1465 = vadd.f32 %v1463, %v1464
    %v1466 = vrot.slane %v1459, 4
    %v1467 = vadd.f32 %v1459, %v1466
    %v1468 = vrot.slane %v1467, 2
    %v1469 = vadd.f32 %v1467, %v1468
    %v1470 = vrot.slane %v1469, 1
    %v1471 = vadd.f32 %v1469, %v1470
    %v1472 = vmul.f32 %v1465, 0.125
    %v1473 = vmul.f32 %v1471, 0.125
    %v1474 = vld [vmem:[#allocation10] sm:$0x3]
    %v1475 = vadd.f32 %v1472, 1e-05
    %v1476 = vadd.f32 %v1473, 1e-05
    %v1477 = vrsqrt.pop %v1475
    %v1478 = vrsqrt.pop %v1476
    %v1481 = vcombine.low %v1477, %v1478
    %v1483 = vunpack.c.l.s4 1966171168
    %v1484 = vunpack.c.0.s8 %v1483
    %v1485 = vlaneseq
    %v1486 = vshrl.u32 %v1485, 7
    %v1487 = vsub.s32 %v1484, %v1486
    %v1488 = vrot.slane %v1481, %v1487
    %v1490 = vunpack.c.l.s4 1966171168
    %v1491 = vunpack.c.0.s8 %v1490
    %v1492 = vlaneseq
    %v1493 = vshrl.u32 %v1492, 7
    %v1494 = vsub.s32 %v1491, %v1493
    %v1495 = vrot.slane %v1488, %v1494
    %v1497 = vmul.f32 %v1474, %v1495
    %v1499 = vlaneseq
    %v1500 = vshrl.u32 %v1499, 7
    %v1501 = vsub.s32 0, %v1500
    %v1502 = vrot.slane %v1497, %v1501
    %v1503 = vlaneseq
    %v1504 = vshrl.u32 %v1503, 7
    %v1505 = vsub.s32 1, %v1504
    %v1506 = vrot.slane %v1497, %v1505
    %v1509 = vmul.f32 %v1456, %v1502
    %v1510 = vmul.f32 %v1457, %v1506
    %v1511 = vld [vmem:[#allocation11] sm:$0x3]
    %v1513 = vlaneseq
    %v1514 = vshrl.u32 %v1513, 7
    %v1515 = vsub.s32 0, %v1514
    %v1516 = vrot.slane %v1511, %v1515
    %v1517 = vlaneseq
    %v1518 = vshrl.u32 %v1517, 7
    %v1519 = vsub.s32 1, %v1518
    %v1520 = vrot.slane %v1511, %v1519
    %v1523 = vadd.f32 %v1509, %v1516
    %v1524 = vadd.f32 %v1510, %v1520
    %v1525 = vpack.c.bf16 %v1523, %v1523
    %v1526 = vpack.c.bf16 %v1524, %v1524
    %v1527 = vld [vmem:[#allocation13] sm:$0xf]
    %v1528 = vld [vmem:[#allocation13 + $0x4] sm:$0xf]
    %v1529 = vld [vmem:[#allocation13 + $0x8] sm:$0xf]
    %v1530 = vld [vmem:[#allocation13 + $0xc] sm:$0xf]
    %v1531 = vld [vmem:[#allocation13 + $0x10] sm:$0xf]
    %v1532 = vld [vmem:[#allocation13 + $0x14] sm:$0xf]
    %v1533 = vld [vmem:[#allocation13 + $0x18] sm:$0xf]
    %v1534 = vld [vmem:[#allocation13 + $0x1c] sm:$0xf]
    %v1535 = vld [vmem:[#allocation13 + $0x20] sm:$0xf]
    %v1536 = vld [vmem:[#allocation13 + $0x24] sm:$0xf]
    %v1537 = vld [vmem:[#allocation13 + $0x28] sm:$0xf]
    %v1538 = vld [vmem:[#allocation13 + $0x2c] sm:$0xf]
    %v1539 = vld [vmem:[#allocation13 + $0x30] sm:$0xf]
    %v1540 = vld [vmem:[#allocation13 + $0x34] sm:$0xf]
    %v1541 = vld [vmem:[#allocation13 + $0x38] sm:$0xf]
    %v1542 = vld [vmem:[#allocation13 + $0x3c] sm:$0xf]
    %v1543 = vld [vmem:[#allocation13 + $0x40] sm:$0xf]
    %v1544 = vld [vmem:[#allocation13 + $0x44] sm:$0xf]
    %v1545 = vld [vmem:[#allocation13 + $0x48] sm:$0xf]
    %v1546 = vld [vmem:[#allocation13 + $0x4c] sm:$0xf]
    %v1547 = vld [vmem:[#allocation13 + $0x50] sm:$0xf]
    %v1548 = vld [vmem:[#allocation13 + $0x54] sm:$0xf]
    %v1549 = vld [vmem:[#allocation13 + $0x58] sm:$0xf]
    %v1550 = vld [vmem:[#allocation13 + $0x5c] sm:$0xf]
    %v1551 = vld [vmem:[#allocation13 + $0x60] sm:$0xf]
    %v1552 = vld [vmem:[#allocation13 + $0x64] sm:$0xf]
    %v1553 = vld [vmem:[#allocation13 + $0x68] sm:$0xf]
    %v1554 = vld [vmem:[#allocation13 + $0x6c] sm:$0xf]
    %v1555 = vld [vmem:[#allocation13 + $0x70] sm:$0xf]
    %v1556 = vld [vmem:[#allocation13 + $0x74] sm:$0xf]
    %v1557 = vld [vmem:[#allocation13 + $0x78] sm:$0xf]
    %v1558 = vld [vmem:[#allocation13 + $0x7c] sm:$0xf]
    %v1559 = vld [vmem:[%s8] sm:$0x1]
    %v1561 = vlaneseq
    %v1562 = vshrl.u32 %v1561, 7
    %v1563 = vsub.s32 0, %v1562
    %v1564 = vrot.slane %v1559, %v1563
    %v1598 = vunpack.c.l.b16 %v1527
    %v1599 = vunpack.c.l.b16 %v1528
    %v1600 = vunpack.c.l.b16 %v1529
    %v1601 = vunpack.c.l.b16 %v1530
    %v1602 = vunpack.c.l.b16 %v1531
    %v1603 = vunpack.c.l.b16 %v1532
    %v1604 = vunpack.c.l.b16 %v1533
    %v1605 = vunpack.c.l.b16 %v1534
    %v1606 = vunpack.c.l.b16 %v1535
    %v1607 = vunpack.c.l.b16 %v1536
    %v1608 = vunpack.c.l.b16 %v1537
    %v1609 = vunpack.c.l.b16 %v1538
    %v1610 = vunpack.c.l.b16 %v1539
    %v1611 = vunpack.c.l.b16 %v1540
    %v1612 = vunpack.c.l.b16 %v1541
    %v1613 = vunpack.c.l.b16 %v1542
    %v1614 = vunpack.c.l.b16 %v1543
    %v1615 = vunpack.c.l.b16 %v1544
    %v1616 = vunpack.c.l.b16 %v1545
    %v1617 = vunpack.c.l.b16 %v1546
    %v1618 = vunpack.c.l.b16 %v1547
    %v1619 = vunpack.c.l.b16 %v1548
    %v1620 = vunpack.c.l.b16 %v1549
    %v1621 = vunpack.c.l.b16 %v1550
    %v1622 = vunpack.c.l.b16 %v1551
    %v1623 = vunpack.c.l.b16 %v1552
    %v1624 = vunpack.c.l.b16 %v1553
    %v1625 = vunpack.c.l.b16 %v1554
    %v1626 = vunpack.c.l.b16 %v1555
    %v1627 = vunpack.c.l.b16 %v1556
    %v1628 = vunpack.c.l.b16 %v1557
    %v1629 = vunpack.c.l.b16 %v1558
    %v1630 = vpack.c.b16 %v1599, %v1598
    %v1631 = vpack.c.b16 %v1601, %v1600
    %v1632 = vpack.c.b16 %v1603, %v1602
    %v1633 = vpack.c.b16 %v1605, %v1604
    %v1634 = vpack.c.b16 %v1607, %v1606
    %v1635 = vpack.c.b16 %v1609, %v1608
    %v1636 = vpack.c.b16 %v1611, %v1610
    %v1637 = vpack.c.b16 %v1613, %v1612
    %v1638 = vpack.c.b16 %v1615, %v1614
    %v1639 = vpack.c.b16 %v1617, %v1616
    %v1640 = vpack.c.b16 %v1619, %v1618
    %v1641 = vpack.c.b16 %v1621, %v1620
    %v1642 = vpack.c.b16 %v1623, %v1622
    %v1643 = vpack.c.b16 %v1625, %v1624
    %v1644 = vpack.c.b16 %v1627, %v1626
    %v1645 = vpack.c.b16 %v1629, %v1628
    %1662 = vmatprep.subr.bf16.mxu0 0
    %1663 = vmatpush1.bf16.msra.mxu0 %v1630
    %1664 = vmatprep.subr.bf16.mxu0 0
    %1665 = vmatpush1.bf16.msra.mxu0 %v1631
    %1666 = vmatprep.subr.bf16.mxu0 0
    %1667 = vmatpush1.bf16.msra.mxu0 %v1632
    %1668 = vmatprep.subr.bf16.mxu0 0
    %1669 = vmatpush1.bf16.msra.mxu0 %v1633
    %1670 = vmatprep.subr.bf16.mxu0 0
    %1671 = vmatpush1.bf16.msra.mxu0 %v1634
    %1672 = vmatprep.subr.bf16.mxu0 0
    %1673 = vmatpush1.bf16.msra.mxu0 %v1635
    %1674 = vmatprep.subr.bf16.mxu0 0
    %1675 = vmatpush1.bf16.msra.mxu0 %v1636
    %1676 = vmatprep.subr.bf16.mxu0 0
    %1677 = vmatpush1.bf16.msra.mxu0 %v1637
    %1678 = vmatprep.subr.bf16.mxu0 0
    %1679 = vmatpush1.bf16.msra.mxu0 %v1638
    %1680 = vmatprep.subr.bf16.mxu0 0
    %1681 = vmatpush1.bf16.msra.mxu0 %v1639
    %1682 = vmatprep.subr.bf16.mxu0 0
    %1683 = vmatpush1.bf16.msra.mxu0 %v1640
    %1684 = vmatprep.subr.bf16.mxu0 0
    %1685 = vmatpush1.bf16.msra.mxu0 %v1641
    %1686 = vmatprep.subr.bf16.mxu0 0
    %1687 = vmatpush1.bf16.msra.mxu0 %v1642
    %1688 = vmatprep.subr.bf16.mxu0 0
    %1689 = vmatpush1.bf16.msra.mxu0 %v1643
    %1690 = vmatprep.subr.bf16.mxu0 0
    %1691 = vmatpush1.bf16.msra.mxu0 %v1644
    %1692 = vmatprep.subr.bf16.mxu0 0
    %1693 = vmatpush1.bf16.msra.mxu0 %v1645
    %1694 = vmatprep.mubr.bf16.mxu0 %v1526
    %1695 = vmatmul.mubr.bf16.gmra.mrb[0].mxu0 %v1525
    %v1696 = vpop.f32.mrb[0].mxu0
    %v1697 = vadd.f32 %v1564, %v1696
    %v1698 = vpop.f32.mrb[0].mxu0
    %v1699 = vpop.f32.mrb[0].mxu0
    %v1700 = vpop.f32.mrb[0].mxu0
    %1701 = vdwg.mxu0
    %v1702 = vmax.f32 %v1697, 0.0
    %v1703 = vrot.slane %v1702, 4
    %v1704 = vadd.f32 %v1702, %v1703
    %v1705 = vrot.slane %v1704, 2
    %v1706 = vadd.f32 %v1704, %v1705
    %v1707 = vrot.slane %v1706, 1
    %v1708 = vadd.f32 %v1706, %v1707
    %v1709 = vmul.f32 %v1708, 0.125
    %v1710 = vsub.f32 %v1702, %v1709
    %v1711 = vmul.f32 %v1710, %v1710
    %v1712 = vrot.slane %v1711, 4
    %v1713 = vadd.f32 %v1711, %v1712
    %v1714 = vrot.slane %v1713, 2
    %v1715 = vadd.f32 %v1713, %v1714
    %v1716 = vrot.slane %v1715, 1
    %v1717 = vadd.f32 %v1715, %v1716
    %v1718 = vmul.f32 %v1717, 0.125
    %v1719 = vld [vmem:[#allocation14] sm:$0x1]
    %v1720 = vadd.f32 %v1718, 1e-05
    %v1721 = vrsqrt.pop %v1720
    %v1722 = vmul.f32 %v1719, %v1721
    %v1724 = vlaneseq
    %v1725 = vshrl.u32 %v1724, 7
    %v1726 = vsub.s32 0, %v1725
    %v1727 = vrot.slane %v1722, %v1726
    %v1729 = vmul.f32 %v1710, %v1727
    %v1730 = vld [vmem:[#allocation16] sm:$0x1]
    %v1732 = vlaneseq
    %v1733 = vshrl.u32 %v1732, 7
    %v1734 = vsub.s32 0, %v1733
    %v1735 = vrot.slane %v1730, %v1734
    %v1737 = vadd.f32 %v1729, %v1735
    %v1738 = vpack.c.bf16 %v1737, %v1737
    %v1739 = vld [vmem:[#allocation17] sm:$0xf]
    %v1740 = vld [vmem:[#allocation17 + $0x4] sm:$0xf]
    %v1741 = vld [vmem:[#allocation17 + $0x8] sm:$0xf]
    %v1742 = vld [vmem:[#allocation17 + $0xc] sm:$0xf]
    %v1743 = vld [vmem:[#allocation17 + $0x10] sm:$0xf]
    %v1744 = vld [vmem:[#allocation17 + $0x14] sm:$0xf]
    %v1745 = vld [vmem:[#allocation17 + $0x18] sm:$0xf]
    %v1746 = vld [vmem:[#allocation17 + $0x1c] sm:$0xf]
    %v1747 = vld [vmem:[#allocation17 + $0x20] sm:$0xf]
    %v1748 = vld [vmem:[#allocation17 + $0x24] sm:$0xf]
    %v1749 = vld [vmem:[#allocation17 + $0x28] sm:$0xf]
    %v1750 = vld [vmem:[#allocation17 + $0x2c] sm:$0xf]
    %v1751 = vld [vmem:[#allocation17 + $0x30] sm:$0xf]
    %v1752 = vld [vmem:[#allocation17 + $0x34] sm:$0xf]
    %v1753 = vld [vmem:[#allocation17 + $0x38] sm:$0xf]
    %v1754 = vld [vmem:[#allocation17 + $0x3c] sm:$0xf]
    %v1755 = vld [vmem:[#allocation19] sm:$0x1]
    %v1757 = vlaneseq
    %v1758 = vshrl.u32 %v1757, 7
    %v1759 = vsub.s32 0, %v1758
    %v1760 = vrot.slane %v1755, %v1759
    %v1778 = vunpack.c.l.b16 %v1739
    %v1779 = vunpack.c.l.b16 %v1740
    %v1780 = vunpack.c.l.b16 %v1741
    %v1781 = vunpack.c.l.b16 %v1742
    %v1782 = vunpack.c.l.b16 %v1743
    %v1783 = vunpack.c.l.b16 %v1744
    %v1784 = vunpack.c.l.b16 %v1745
    %v1785 = vunpack.c.l.b16 %v1746
    %v1786 = vunpack.c.l.b16 %v1747
    %v1787 = vunpack.c.l.b16 %v1748
    %v1788 = vunpack.c.l.b16 %v1749
    %v1789 = vunpack.c.l.b16 %v1750
    %v1790 = vunpack.c.l.b16 %v1751
    %v1791 = vunpack.c.l.b16 %v1752
    %v1792 = vunpack.c.l.b16 %v1753
    %v1793 = vunpack.c.l.b16 %v1754
    %v1794 = vpack.c.b16 %v1779, %v1778
    %v1795 = vpack.c.b16 %v1781, %v1780
    %v1796 = vpack.c.b16 %v1783, %v1782
    %v1797 = vpack.c.b16 %v1785, %v1784
    %v1798 = vpack.c.b16 %v1787, %v1786
    %v1799 = vpack.c.b16 %v1789, %v1788
    %v1800 = vpack.c.b16 %v1791, %v1790
    %v1801 = vpack.c.b16 %v1793, %v1792
    %1810 = vmatprep.subr.bf16.mxu0 0
    %1811 = vmatpush1.bf16.msra.mxu0 %v1794
    %1812 = vmatprep.subr.bf16.mxu0 0
    %1813 = vmatpush1.bf16.msra.mxu0 %v1795
    %1814 = vmatprep.subr.bf16.mxu0 0
    %1815 = vmatpush1.bf16.msra.mxu0 %v1796
    %1816 = vmatprep.subr.bf16.mxu0 0
    %1817 = vmatpush1.bf16.msra.mxu0 %v1797
    %1818 = vmatprep.subr.bf16.mxu0 0
    %1819 = vmatpush1.bf16.msra.mxu0 %v1798
    %1820 = vmatprep.subr.bf16.mxu0 0
    %1821 = vmatpush1.bf16.msra.mxu0 %v1799
    %1822 = vmatprep.subr.bf16.mxu0 0
    %1823 = vmatpush1.bf16.msra.mxu0 %v1800
    %1824 = vmatprep.subr.bf16.mxu0 0
    %1825 = vmatpush1.bf16.msra.mxu0 %v1801
    %1826 = vmatprep.subr.bf16.mxu0 0
    %1827 = vmatpush1.bf16.msra.mxu0 0
    %1828 = vmatprep.subr.bf16.mxu0 0
    %1829 = vmatpush1.bf16.msra.mxu0 0
    %1830 = vmatprep.subr.bf16.mxu0 0
    %1831 = vmatpush1.bf16.msra.mxu0 0
    %1832 = vmatprep.subr.bf16.mxu0 0
    %1833 = vmatpush1.bf16.msra.mxu0 0
    %1834 = vmatprep.subr.bf16.mxu0 0
    %1835 = vmatpush1.bf16.msra.mxu0 0
    %1836 = vmatprep.subr.bf16.mxu0 0
    %1837 = vmatpush1.bf16.msra.mxu0 0
    %1838 = vmatprep.subr.bf16.mxu0 0
    %1839 = vmatpush1.bf16.msra.mxu0 0
    %1840 = vmatprep.subr.bf16.mxu0 0
    %1841 = vmatpush1.bf16.msra.mxu0 0
    %1842 = vmatprep.mubr.bf16.mxu0 0
    %1843 = vmatmul.mubr.bf16.gmra.mrb[0].mxu0 %v1738
    %v1844 = vpop.f32.mrb[0].mxu0
    %v1845 = vadd.f32 %v1760, %v1844
    %v1846 = vpop.f32.mrb[0].mxu0
    %v1847 = vpop.f32.mrb[0].mxu0
    %v1848 = vpop.f32.mrb[0].mxu0
    %1849 = vdwg.mxu0
    %v1850 = vmax.f32 %v1845, 0.0
    %v1851 = vrot.slane %v1850, 4
    %v1852 = vadd.f32 %v1850, %v1851
    %v1853 = vrot.slane %v1852, 2
    %v1854 = vadd.f32 %v1852, %v1853
    %v1855 = vrot.slane %v1854, 1
    %v1856 = vadd.f32 %v1854, %v1855
    %v1857 = vmul.f32 %v1856, 0.125
    %v1858 = vsub.f32 %v1850, %v1857
    %v1859 = vmul.f32 %v1858, %v1858
    %v1860 = vrot.slane %v1859, 4
    %v1861 = vadd.f32 %v1859, %v1860
    %v1862 = vrot.slane %v1861, 2
    %v1863 = vadd.f32 %v1861, %v1862
    %v1864 = vrot.slane %v1863, 1
    %v1865 = vadd.f32 %v1863, %v1864
    %v1866 = vmul.f32 %v1865, 0.125
    %v1867 = vld [vmem:[#allocation20] sm:$0x1]
    %v1868 = vadd.f32 %v1866, 1e-05
    %v1869 = vrsqrt.pop %v1868
    %v1870 = vmul.f32 %v1867, %v1869
    %v1872 = vlaneseq
    %v1873 = vshrl.u32 %v1872, 7
    %v1874 = vsub.s32 0, %v1873
    %v1875 = vrot.slane %v1870, %v1874
    %v1877 = vmul.f32 %v1858, %v1875
    %v1878 = vld [vmem:[#allocation22] sm:$0x1]
    %v1880 = vlaneseq
    %v1881 = vshrl.u32 %v1880, 7
    %v1882 = vsub.s32 0, %v1881
    %v1883 = vrot.slane %v1878, %v1882
    %v1885 = vadd.f32 %v1877, %v1883
    %v1886 = vpack.c.bf16 %v1885, %v1885
    %v1887 = vld [vmem:[%s15] sm:$0xf]
    %v1888 = vld [vmem:[%s15 + $0x4] sm:$0xf]
    %v1889 = vld [vmem:[%s15 + $0x8] sm:$0xf]
    %v1890 = vld [vmem:[%s15 + $0xc] sm:$0xf]
    %v1891 = vld [vmem:[%s15 + $0x10] sm:$0xf]
    %v1892 = vld [vmem:[%s15 + $0x14] sm:$0xf]
    %v1893 = vld [vmem:[%s15 + $0x18] sm:$0xf]
    %v1894 = vld [vmem:[%s15 + $0x1c] sm:$0xf]
    %v1895 = vld [vmem:[%s15 + $0x20] sm:$0xf]
    %v1896 = vld [vmem:[%s15 + $0x24] sm:$0xf]
    %v1897 = vld [vmem:[%s15 + $0x28] sm:$0xf]
    %v1898 = vld [vmem:[%s15 + $0x2c] sm:$0xf]
    %v1899 = vld [vmem:[%s15 + $0x30] sm:$0xf]
    %v1900 = vld [vmem:[%s15 + $0x34] sm:$0xf]
    %v1901 = vld [vmem:[%s15 + $0x38] sm:$0xf]
    %v1902 = vld [vmem:[%s15 + $0x3c] sm:$0xf]
    %v1903 = vld [vmem:[%s16] sm:$0x1]
    %v1905 = vlaneseq
    %v1906 = vshrl.u32 %v1905, 7
    %v1907 = vsub.s32 0, %v1906
    %v1908 = vrot.slane %v1903, %v1907
    %v1926 = vunpack.c.l.b16 %v1887
    %v1927 = vunpack.c.l.b16 %v1888
    %v1928 = vunpack.c.l.b16 %v1889
    %v1929 = vunpack.c.l.b16 %v1890
    %v1930 = vunpack.c.l.b16 %v1891
    %v1931 = vunpack.c.l.b16 %v1892
    %v1932 = vunpack.c.l.b16 %v1893
    %v1933 = vunpack.c.l.b16 %v1894
    %v1934 = vunpack.c.l.b16 %v1895
    %v1935 = vunpack.c.l.b16 %v1896
    %v1936 = vunpack.c.l.b16 %v1897
    %v1937 = vunpack.c.l.b16 %v1898
    %v1938 = vunpack.c.l.b16 %v1899
    %v1939 = vunpack.c.l.b16 %v1900
    %v1940 = vunpack.c.l.b16 %v1901
    %v1941 = vunpack.c.l.b16 %v1902
    %v1942 = vpack.c.b16 %v1927, %v1926
    %v1943 = vpack.c.b16 %v1929, %v1928
    %v1944 = vpack.c.b16 %v1931, %v1930
    %v1945 = vpack.c.b16 %v1933, %v1932
    %v1946 = vpack.c.b16 %v1935, %v1934
    %v1947 = vpack.c.b16 %v1937, %v1936
    %v1948 = vpack.c.b16 %v1939, %v1938
    %v1949 = vpack.c.b16 %v1941, %v1940
    %1958 = vmatprep.subr.bf16.mxu0 0
    %1959 = vmatpush1.bf16.msra.mxu0 %v1942
    %1960 = vmatprep.subr.bf16.mxu0 0
    %1961 = vmatpush1.bf16.msra.mxu0 %v1943
    %1962 = vmatprep.subr.bf16.mxu0 0
    %1963 = vmatpush1.bf16.msra.mxu0 %v1944
    %1964 = vmatprep.subr.bf16.mxu0 0
    %1965 = vmatpush1.bf16.msra.mxu0 %v1945
    %1966 = vmatprep.subr.bf16.mxu0 0
    %1967 = vmatpush1.bf16.msra.mxu0 %v1946
    %1968 = vmatprep.subr.bf16.mxu0 0
    %1969 = vmatpush1.bf16.msra.mxu0 %v1947
    %1970 = vmatprep.subr.bf16.mxu0 0
    %1971 = vmatpush1.bf16.msra.mxu0 %v1948
    %1972 = vmatprep.subr.bf16.mxu0 0
    %1973 = vmatpush1.bf16.msra.mxu0 %v1949
    %1974 = vmatprep.subr.bf16.mxu0 0
    %1975 = vmatpush1.bf16.msra.mxu0 0
    %1976 = vmatprep.subr.bf16.mxu0 0
    %1977 = vmatpush1.bf16.msra.mxu0 0
    %1978 = vmatprep.subr.bf16.mxu0 0
    %1979 = vmatpush1.bf16.msra.mxu0 0
    %1980 = vmatprep.subr.bf16.mxu0 0
    %1981 = vmatpush1.bf16.msra.mxu0 0
    %1982 = vmatprep.subr.bf16.mxu0 0
    %1983 = vmatpush1.bf16.msra.mxu0 0
    %1984 = vmatprep.subr.bf16.mxu0 0
    %1985 = vmatpush1.bf16.msra.mxu0 0
    %1986 = vmatprep.subr.bf16.mxu0 0
    %1987 = vmatpush1.bf16.msra.mxu0 0
    %1988 = vmatprep.subr.bf16.mxu0 0
    %1989 = vmatpush1.bf16.msra.mxu0 0
    %1990 = vmatprep.mubr.bf16.mxu0 0
    %1991 = vmatmul.mubr.bf16.gmra.mrb[0].mxu0 %v1886
    %v1992 = vpop.f32.mrb[0].mxu0
    %v1993 = vadd.f32 %v1908, %v1992
    %v1994 = vpop.f32.mrb[0].mxu0
    %v1995 = vpop.f32.mrb[0].mxu0
    %v1996 = vpop.f32.mrb[0].mxu0
    %1997 = vdwg.mxu0
    %1998 = vmax.xlane.f32.xlu0 %v1993
    %v1999 = vpop.xlane.xlu0 %1998
    %v2000 = vsub.f32 %v1993, %v1999
    %v2001 = vmul.f32 %v2000, 1.442695
    %v2002 = vpow.pop %v2001
    %2003 = vadd.xlane.f32.xlu0 %v2002
    %v2004 = vpop.xlane.xlu0 %2003
    %v2005 = vrcp.pop %v2004
    %v2006 = vmul.f32 %v2002, %v2005
    %2007 = vst [vmem:[#allocation23] sm:$0xff] %v2006
    // Predicated region
    $region122: #{tpu_custom_call.1} parent=1 // pred_check
      _
    $region123: #{tpu_custom_call.1} parent=1 // pred_check_branch
      %2009 = sbr.rel (0) target = $region125
    $region124: #{tpu_custom_call.1} parent=1 // pred_region
      %s2011 = ssub.s32 128, 128
      %2012 = vsyncadd [#allocation4], %s2011
      %s2014 = sshll.u32 [#allocation23], 4
      %s2015 = int_to_ptr.vmem [resolvable:$true] %s2014
      %2017 = dma.vmem_to_hbm [thread:$0]  %s2015, 128, %s17, [#allocation4]
    $region125: #{tpu_custom_call.1} parent=1 // pred_fallthru
      _
    // Predicated region
    $region126: #{tpu_custom_call.1} parent=1 // pred_check
      _
    $region127: #{tpu_custom_call.1} parent=1 // pred_check_branch
      %2019 = sbr.rel (0) target = $region129
    $region128: #{tpu_custom_call.1} parent=1 // pred_region
      %2020 = dma.done [#allocation4], 128
    $region129: #{tpu_custom_call.1} parent=1 // pred_fallthru
      _
    %2021 = vsyncpa [#allocation3], 1
    %2022 = vsyncpa [#allocation6], 1
    %2023 = vsyncpa [#allocation9], 1
    %2024 = vsyncpa [#allocation12], 1
    %2025 = vsyncpa [#allocation15], 1
    %2026 = vsyncpa [#allocation18], 1
    %2027 = vsyncpa [#allocation21], 1
    %2028 = vsyncpa [#allocation4], 1

</llo_original>
